<compile_context>
chip_gen: v7x
topology: tpu7x:2x2x1
jax: 0.10.0
libtpu: 0.0.40
codegen_flags: <defaults>
</compile_context>

<pallas_src>
import functools

import jax
import jax.numpy as jnp
import numpy as np
from jax import lax
from jax.experimental import pallas as pl
from jax.experimental.pallas import tpu as pltpu


def _round_up(x, m):
    return (x + m - 1) // m * m


# ----------------------------------------------------------------------------
# Fused kernel: L-layer GRU cell step + LayerNorm, one batch tile per grid step
# ----------------------------------------------------------------------------
def _fused_rnn_kernel(x_ref, hxs_ref, mask_ref, wx0_ref, wu_ref, wh_ref,
                      b_ref, gamma_ref, beta_ref, xout_ref, hout_ref,
                      *, num_layers, hidden, hidden_pad):
    Hp = hidden_pad
    mask = mask_ref[...]                                   # (TN, 1) f32

    layer_in = x_ref[...]                                  # (TN, Dp) bf16
    h_new = None
    for l in range(num_layers):                            # static unroll (small L)
        h_prev = hxs_ref[l] * mask                         # (TN, Hp) f32, masked reset
        w_in = wx0_ref[...] if l == 0 else wu_ref[l - 1]
        # Two bf16 MXU contractions per layer, f32 accumulation.
        # Column blocks (each Hp wide, lane-aligned): s_r | s_z | i_n | h_n
        g = (jnp.dot(layer_in, w_in, preferred_element_type=jnp.float32)
             + jnp.dot(h_prev.astype(jnp.bfloat16), wh_ref[l],
                       preferred_element_type=jnp.float32)
             + b_ref[l])

        r = jax.nn.sigmoid(g[:, 0 * Hp:1 * Hp])
        z = jax.nn.sigmoid(g[:, 1 * Hp:2 * Hp])
        n = jnp.tanh(g[:, 2 * Hp:3 * Hp] + r * g[:, 3 * Hp:4 * Hp])
        h_new = (1.0 - z) * n + z * h_prev                 # (TN, Hp) f32

        hout_ref[l] = h_new                                # lane-dense store
        if l + 1 < num_layers:
            layer_in = h_new.astype(jnp.bfloat16)          # next layer's input
        # TODO(synk): on v6e/v7x the sigmoid/tanh could run in bf16 (2x EUP
        # throughput); kept f32 here so the same kernel is exact-enough on v5e.

    # LayerNorm over the valid H lanes of the top-layer output.
    col = lax.broadcasted_iota(jnp.int32, (1, Hp), 1)
    valid = (col < hidden).astype(jnp.float32)             # (1, Hp)
    inv_h = 1.0 / float(hidden)
    xm = h_new * valid
    mean = jnp.sum(xm, axis=-1, keepdims=True) * inv_h
    cent = (xm - mean) * valid
    var = jnp.sum(cent * cent, axis=-1, keepdims=True) * inv_h
    inv = lax.rsqrt(var + 1e-5)
    xout_ref[...] = cent * inv * gamma_ref[...] + beta_ref[...]


# ----------------------------------------------------------------------------
# Host wrapper (pad only if needed -> fused kernel -> slice)
# ----------------------------------------------------------------------------
def make_rnn_forward(num_layers, inputs_dim, hidden):
    Hp = _round_up(hidden, 128)
    Dp = _round_up(inputs_dim, 128)
    L = num_layers
    Lm1 = max(L - 1, 1)

    @jax.jit
    def forward(x, hxs, masks, w_x0, w_up, w_hh, b_cat, gamma_pad, beta_pad):
        n = x.shape[0]
        if n >= 1024:
            tile_n = 512                                   # big tiles amortize ~0.35us/step
        elif n > 128:
            tile_n = _round_up((n + 1) // 2, 8)            # >=2 steps feeds both v7x TCs
        else:
            tile_n = _round_up(max(n, 8), 8)
        n_pad = _round_up(n, tile_n)

        # Layout plumbing — skipped whenever shapes are already aligned.
        x_b = x.astype(jnp.bfloat16)
        if n_pad == n and Dp == inputs_dim:
            x_p = x_b
        else:
            x_p = jnp.zeros((n_pad, Dp), jnp.bfloat16).at[:n, :inputs_dim].set(x_b)
        h_lm = jnp.transpose(hxs, (1, 0, 2))               # (L, N, H) layer-major
        if n_pad == n and Hp == hidden:
            h_p = h_lm
        else:
            h_p = jnp.zeros((L, n_pad, Hp), jnp.float32).at[:, :n, :hidden].set(h_lm)
        if n_pad == n:
            m_p = masks.astype(jnp.float32)
        else:
            m_p = jnp.zeros((n_pad, 1), jnp.float32).at[:n, :].set(masks)

        kernel = functools.partial(
            _fused_rnn_kernel, num_layers=L, hidden=hidden, hidden_pad=Hp)

        # VMEM budget: 1x resident constants (Buffered(1)) + 2x pipelined tiles.
        w_bytes = (Dp * 4 * Hp + (Lm1 + L) * Hp * 4 * Hp) * 2        # bf16 weights
        const_bytes = w_bytes + L * 4 * Hp * 4 + 2 * Hp * 4          # + biases, LN
        tile_bytes = (tile_n * Dp * 2 + L * tile_n * Hp * 4          # x, hxs in
                      + tile_n * 128 * 4                             # mask (lane-padded)
                      + tile_n * Hp * 4 + L * tile_n * Hp * 4)       # outputs
        vmem_limit = int(min(max(const_bytes + 2 * tile_bytes + (8 << 20),
                                 32 << 20), 64 << 20))

        flops = 2 * n_pad * (Dp + (2 * L - 1) * Hp) * 4 * Hp
        transcendentals = 3 * L * n_pad * Hp
        bytes_accessed = (n_pad * Dp * 2 + 2 * L * n_pad * Hp * 4 + n_pad * 4
                          + n_pad * Hp * 4 + const_bytes)

        const1 = pl.Buffered(1)   # fetched once, stays VMEM-resident across the grid

        x_out_p, h_out_p = pl.pallas_call(
            kernel,
            out_shape=(jax.ShapeDtypeStruct((n_pad, Hp), jnp.float32),
                       jax.ShapeDtypeStruct((L, n_pad, Hp), jnp.float32)),
            grid_spec=pltpu.PrefetchScalarGridSpec(
                num_scalar_prefetch=0,
                grid=(n_pad // tile_n,),
                in_specs=[
                    pl.BlockSpec((tile_n, Dp), lambda i: (i, 0)),
                    pl.BlockSpec((L, tile_n, Hp), lambda i: (0, i, 0)),
                    pl.BlockSpec((tile_n, 1), lambda i: (i, 0)),
                    # Constant operands: same block every step, single-buffered.
                    pl.BlockSpec((Dp, 4 * Hp), lambda i: (0, 0),
                                 pipeline_mode=const1),
                    pl.BlockSpec((Lm1, Hp, 4 * Hp), lambda i: (0, 0, 0),
                                 pipeline_mode=const1),
                    pl.BlockSpec((L, Hp, 4 * Hp), lambda i: (0, 0, 0),
                                 pipeline_mode=const1),
                    pl.BlockSpec((L, 1, 4 * Hp), lambda i: (0, 0, 0),
                                 pipeline_mode=const1),
                    pl.BlockSpec((1, Hp), lambda i: (0, 0),
                                 pipeline_mode=const1),
                    pl.BlockSpec((1, Hp), lambda i: (0, 0),
                                 pipeline_mode=const1),
                ],
                out_specs=[
                    pl.BlockSpec((tile_n, Hp), lambda i: (i, 0)),
                    pl.BlockSpec((L, tile_n, Hp), lambda i: (0, i, 0)),
                ],
            ),
            compiler_params=pltpu.CompilerParams(
                dimension_semantics=("parallel",),      # shards batch on v7x TCs
                vmem_limit_bytes=vmem_limit),
            cost_estimate=pl.CostEstimate(flops=flops,
                                          transcendentals=transcendentals,
                                          bytes_accessed=bytes_accessed),
        )(x_p, h_p, m_p, w_x0, w_up, w_hh, b_cat, gamma_pad, beta_pad)

        x_out = x_out_p[:n, :hidden]
        hxs_out = jnp.transpose(h_out_p[:, :n, :hidden], (1, 0, 2))
        return x_out, hxs_out

    return forward


# ----------------------------------------------------------------------------
# Parameter init (mirrors RNNLayer.__init__) and packing into the fused layout
# ----------------------------------------------------------------------------
def init_params(key, inputs_dim, outputs_dim, recurrent_N):
    ortho = jax.nn.initializers.orthogonal()
    layers = []
    for l in range(recurrent_N):
        d_in = inputs_dim if l == 0 else outputs_dim
        key, k1, k2 = jax.random.split(key, 3)
        layers.append({
            # PyTorch layout: weight_ih_l{l} is (3H, D), gate order r|z|n.
            "w_ih": ortho(k1, (3 * outputs_dim, d_in), jnp.float32),
            "w_hh": ortho(k2, (3 * outputs_dim, outputs_dim), jnp.float32),
            "b_ih": jnp.zeros((3 * outputs_dim,), jnp.float32),
            "b_hh": jnp.zeros((3 * outputs_dim,), jnp.float32),
        })
    return {
        "layers": layers,
        "ln_gamma": jnp.ones((outputs_dim,), jnp.float32),
        "ln_beta": jnp.zeros((outputs_dim,), jnp.float32),
        "inputs_dim": inputs_dim,
        "hidden": outputs_dim,
    }


def pack_params(params):
    H = params["hidden"]
    D_in = params["inputs_dim"]
    L = len(params["layers"])
    Hp = _round_up(H, 128)
    Dp = _round_up(D_in, 128)
    Lm1 = max(L - 1, 1)

    # Padded weight/bias columns stay 0 -> padded lanes of h stay exactly 0
    # through the GRU update (invariant required by the kernel).
    w_x0 = np.zeros((Dp, 4 * Hp), np.float32)        # layer-0 input weights
    w_up = np.zeros((Lm1, Hp, 4 * Hp), np.float32)   # layer>0 input weights
    w_hh = np.zeros((L, Hp, 4 * Hp), np.float32)     # hidden weights
    b_cat = np.zeros((L, 1, 4 * Hp), np.float32)
    for l, layer in enumerate(params["layers"]):
        d_l = D_in if l == 0 else H
        wih = np.asarray(layer["w_ih"]).T            # (d_l, 3H): columns r|z|n
        whh = np.asarray(layer["w_hh"]).T            # (H, 3H)
        bih = np.asarray(layer["b_ih"])
        bhh = np.asarray(layer["b_hh"])
        w_in_dst = w_x0 if l == 0 else w_up[l - 1]
        for g in range(3):                           # input weights -> blocks 0,1,2
            w_in_dst[0:d_l, g * Hp:g * Hp + H] = wih[:, g * H:(g + 1) * H]
        # hidden weights: r,z -> blocks 0,1; n -> block 3
        w_hh[l, 0:H, 0 * Hp:0 * Hp + H] = whh[:, 0:H]
        w_hh[l, 0:H, 1 * Hp:1 * Hp + H] = whh[:, H:2 * H]
        w_hh[l, 0:H, 3 * Hp:3 * Hp + H] = whh[:, 2 * H:3 * H]
        # biases: r,z folded (i+h); b_in in block 2; b_hn in block 3 so that
        # n = tanh(i_n + b_in + r*(W_hn h + b_hn)) matches PyTorch exactly.
        b_cat[l, 0, 0 * Hp:0 * Hp + H] = bih[0:H] + bhh[0:H]
        b_cat[l, 0, 1 * Hp:1 * Hp + H] = bih[H:2 * H] + bhh[H:2 * H]
        b_cat[l, 0, 2 * Hp:2 * Hp + H] = bih[2 * H:3 * H]
        b_cat[l, 0, 3 * Hp:3 * Hp + H] = bhh[2 * H:3 * H]

    gamma_pad = np.zeros((1, Hp), np.float32)
    gamma_pad[0, :H] = np.asarray(params["ln_gamma"])
    beta_pad = np.zeros((1, Hp), np.float32)
    beta_pad[0, :H] = np.asarray(params["ln_beta"])
    return {
        "w_x0": jnp.asarray(w_x0, jnp.bfloat16),
        "w_up": jnp.asarray(w_up, jnp.bfloat16),
        "w_hh": jnp.asarray(w_hh, jnp.bfloat16),
        "b_cat": jnp.asarray(b_cat),
        "gamma_pad": jnp.asarray(gamma_pad),
        "beta_pad": jnp.asarray(beta_pad),
    }


# ----------------------------------------------------------------------------
# Pure-JAX references for correctness checking
#   matmul_bf16=True  : matmul operands rounded to bf16 (matches kernel dtype)
#   matmul_bf16=False : full-f32 HIGHEST precision (PyTorch semantics)
# ----------------------------------------------------------------------------
def rnn_layer_reference(x, hxs, masks, params, matmul_bf16=False):
    H = params["hidden"]
    hi = lax.Precision.HIGHEST

    def mm(a, w):
        if matmul_bf16:
            return jnp.dot(a.astype(jnp.bfloat16), w.astype(jnp.bfloat16),
                           preferred_element_type=jnp.float32)
        return jnp.dot(a, w, precision=hi)

    layer_in = x
    new_h = []
    for l, layer in enumerate(params["layers"]):
        h = hxs[:, l, :] * masks
        gi = mm(layer_in, layer["w_ih"].T) + layer["b_ih"]
        gh = mm(h, layer["w_hh"].T) + layer["b_hh"]
        r = jax.nn.sigmoid(gi[:, :H] + gh[:, :H])
        z = jax.nn.sigmoid(gi[:, H:2 * H] + gh[:, H:2 * H])
        n = jnp.tanh(gi[:, 2 * H:] + r * gh[:, 2 * H:])
        h_new = (1.0 - z) * n + z * h
        new_h.append(h_new)
        layer_in = h_new
    mean = jnp.mean(layer_in, axis=-1, keepdims=True)
    var = jnp.mean((layer_in - mean) ** 2, axis=-1, keepdims=True)
    x_out = ((layer_in - mean) * lax.rsqrt(var + 1e-5)
             * params["ln_gamma"] + params["ln_beta"])
    return x_out, jnp.stack(new_h, axis=1)


if __name__ == "__main__":
    N = 8            # batch
    INPUTS_DIM = 32
    OUTPUTS_DIM = 32
    RECURRENT_N = 2

    key = jax.random.PRNGKey(0)
    kp, kx, kh, km = jax.random.split(key, 4)

    params = init_params(kp, INPUTS_DIM, OUTPUTS_DIM, RECURRENT_N)
    packed = pack_params(params)
    forward = make_rnn_forward(RECURRENT_N, INPUTS_DIM, OUTPUTS_DIM)

    x = jax.random.normal(kx, (N, INPUTS_DIM), jnp.float32)
    hxs = jax.random.normal(kh, (N, RECURRENT_N, OUTPUTS_DIM), jnp.float32)
    masks = (jax.random.uniform(km, (N, 1)) > 0.25).astype(jnp.float32)

    x_out, hxs_out = forward(x, hxs, masks,
                             packed["w_x0"], packed["w_up"], packed["w_hh"],
                             packed["b_cat"], packed["gamma_pad"],
                             packed["beta_pad"])
    jax.block_until_ready((x_out, hxs_out))

    # Structural check against a matched-precision (bf16-operand matmul) ref.
    x_mref, h_mref = rnn_layer_reference(x, hxs, masks, params, matmul_bf16=True)
    np.testing.assert_allclose(np.asarray(x_out), np.asarray(x_mref),
                               rtol=5e-3, atol=5e-3)
    np.testing.assert_allclose(np.asarray(hxs_out), np.asarray(h_mref),
                               rtol=5e-3, atol=5e-3)

    # Semantics check against the full-f32 PyTorch-equivalent reference
    # (looser tolerance since the kernel's MXU operands are bf16).
    x_ref, h_ref = rnn_layer_reference(x, hxs, masks, params, matmul_bf16=False)
    np.testing.assert_allclose(np.asarray(x_out), np.asarray(x_ref),
                               rtol=5e-2, atol=5e-2)
    np.testing.assert_allclose(np.asarray(hxs_out), np.asarray(h_ref),
                               rtol=5e-2, atol=5e-2)

    assert x_out.shape == (N, OUTPUTS_DIM)
    assert hxs_out.shape == (N, RECURRENT_N, OUTPUTS_DIM)
    print("KERNEL_OK")
</pallas_src>

<mosaic_0001>
module attributes {stable_mosaic.version = 11 : i64} {
  func.func @_fused_rnn_kernel(%arg0: i32, %arg1: memref<8x128xbf16, #tpu.memory_space<vmem>>, %arg2: memref<2x8x128xf32, #tpu.memory_space<vmem>>, %arg3: memref<8x1xf32, #tpu.memory_space<vmem>>, %arg4: memref<128x512xbf16, #tpu.memory_space<vmem>>, %arg5: memref<1x128x512xbf16, #tpu.memory_space<vmem>>, %arg6: memref<2x128x512xbf16, #tpu.memory_space<vmem>>, %arg7: memref<2x1x512xf32, #tpu.memory_space<vmem>>, %arg8: memref<1x128xf32, #tpu.memory_space<vmem>>, %arg9: memref<1x128xf32, #tpu.memory_space<vmem>>, %arg10: memref<8x128xf32, #tpu.memory_space<vmem>>, %arg11: memref<2x8x128xf32, #tpu.memory_space<vmem>>) attributes {dimension_semantics = [#tpu.dimension_semantics<parallel>], iteration_bounds = array<i64: 1>, scalar_prefetch = 0 : i64, scratch_operands = 0 : i64, tpu.core_type = #tpu.core_type<tc>, window_params = [{transform_indices = @transform_0, window_bounds = array<i64: 8, 128>}, {transform_indices = @transform_1, window_bounds = array<i64: 2, 8, 128>}, {transform_indices = @transform_2, window_bounds = array<i64: 8, 1>}, {pipeline_mode = #tpu.pipeline_mode<synchronous>, transform_indices = @transform_3, window_bounds = array<i64: 128, 512>}, {pipeline_mode = #tpu.pipeline_mode<synchronous>, transform_indices = @transform_4, window_bounds = array<i64: 1, 128, 512>}, {pipeline_mode = #tpu.pipeline_mode<synchronous>, transform_indices = @transform_5, window_bounds = array<i64: 2, 128, 512>}, {pipeline_mode = #tpu.pipeline_mode<synchronous>, transform_indices = @transform_6, window_bounds = array<i64: 2, 1, 512>}, {pipeline_mode = #tpu.pipeline_mode<synchronous>, transform_indices = @transform_7, window_bounds = array<i64: 1, 128>}, {pipeline_mode = #tpu.pipeline_mode<synchronous>, transform_indices = @transform_8, window_bounds = array<i64: 1, 128>}, {transform_indices = @transform_9, window_bounds = array<i64: 8, 128>}, {transform_indices = @transform_10, window_bounds = array<i64: 2, 8, 128>}]} {
    %c0 = arith.constant 0 : index
    %c0_0 = arith.constant 0 : index
    %0 = vector.load %arg3[%c0, %c0_0] : memref<8x1xf32, #tpu.memory_space<vmem>>, vector<8x1xf32>
    %c0_1 = arith.constant 0 : index
    %c0_2 = arith.constant 0 : index
    %1 = vector.load %arg1[%c0_1, %c0_2] : memref<8x128xbf16, #tpu.memory_space<vmem>>, vector<8x128xbf16>
    %c0_3 = arith.constant 0 : index
    %c0_4 = arith.constant 0 : index
    %c0_5 = arith.constant 0 : index
    %2 = vector.load %arg2[%c0_3, %c0_4, %c0_5] : memref<2x8x128xf32, #tpu.memory_space<vmem>>, vector<1x8x128xf32>
    %3 = vector.shape_cast %2 : vector<1x8x128xf32> to vector<8x128xf32>
    %4 = vector.broadcast %0 : vector<8x1xf32> to vector<8x128xf32>
    %5 = arith.mulf %3, %4 : vector<8x128xf32>
    %c0_6 = arith.constant 0 : index
    %c0_7 = arith.constant 0 : index
    %6 = vector.load %arg4[%c0_6, %c0_7] : memref<128x512xbf16, #tpu.memory_space<vmem>>, vector<128x512xbf16>
    %cst = arith.constant dense<0.000000e+00> : vector<8x512xf32>
    %7 = tpu.matmul %1, %6, %cst {dimension_numbers = #tpu.dot_dimension_numbers<[1], [0], [0], [1], [0, 0, 1, 1], [], []>} : vector<8x128xbf16>, vector<128x512xbf16>, vector<8x512xf32> -> vector<8x512xf32>
    %8 = arith.truncf %5 : vector<8x128xf32> to vector<8x128xbf16>
    %c0_8 = arith.constant 0 : index
    %c0_9 = arith.constant 0 : index
    %c0_10 = arith.constant 0 : index
    %9 = vector.load %arg6[%c0_8, %c0_9, %c0_10] : memref<2x128x512xbf16, #tpu.memory_space<vmem>>, vector<1x128x512xbf16>
    %10 = vector.shape_cast %9 : vector<1x128x512xbf16> to vector<128x512xbf16>
    %cst_11 = arith.constant dense<0.000000e+00> : vector<8x512xf32>
    %11 = tpu.matmul %8, %10, %cst_11 {dimension_numbers = #tpu.dot_dimension_numbers<[1], [0], [0], [1], [0, 0, 1, 1], [], []>} : vector<8x128xbf16>, vector<128x512xbf16>, vector<8x512xf32> -> vector<8x512xf32>
    %12 = arith.addf %7, %11 : vector<8x512xf32>
    %c0_12 = arith.constant 0 : index
    %c0_13 = arith.constant 0 : index
    %c0_14 = arith.constant 0 : index
    %13 = vector.load %arg7[%c0_12, %c0_13, %c0_14] : memref<2x1x512xf32, #tpu.memory_space<vmem>>, vector<1x1x512xf32>
    %14 = vector.shape_cast %13 : vector<1x1x512xf32> to vector<1x512xf32>
    %15 = vector.broadcast %14 : vector<1x512xf32> to vector<8x512xf32>
    %16 = arith.addf %12, %15 : vector<8x512xf32>
    %17 = vector.extract_strided_slice %16 {offsets = [0, 0], sizes = [8, 128], strides = [1, 1]} : vector<8x512xf32> to vector<8x128xf32>
    %18 = arith.negf %17 : vector<8x128xf32>
    %19 = math.exp %18 : vector<8x128xf32>
    %cst_15 = arith.constant 1.000000e+00 : f32
    %20 = vector.broadcast %cst_15 : f32 to vector<8x128xf32>
    %21 = arith.addf %20, %19 : vector<8x128xf32>
    %22 = arith.divf %20, %21 : vector<8x128xf32>
    %23 = vector.extract_strided_slice %16 {offsets = [0, 128], sizes = [8, 128], strides = [1, 1]} : vector<8x512xf32> to vector<8x128xf32>
    %24 = arith.negf %23 : vector<8x128xf32>
    %25 = math.exp %24 : vector<8x128xf32>
    %cst_16 = arith.constant 1.000000e+00 : f32
    %26 = vector.broadcast %cst_16 : f32 to vector<8x128xf32>
    %27 = arith.addf %26, %25 : vector<8x128xf32>
    %28 = arith.divf %26, %27 : vector<8x128xf32>
    %29 = vector.extract_strided_slice %16 {offsets = [0, 256], sizes = [8, 128], strides = [1, 1]} : vector<8x512xf32> to vector<8x128xf32>
    %30 = vector.extract_strided_slice %16 {offsets = [0, 384], sizes = [8, 128], strides = [1, 1]} : vector<8x512xf32> to vector<8x128xf32>
    %31 = arith.mulf %22, %30 : vector<8x128xf32>
    %32 = arith.addf %29, %31 : vector<8x128xf32>
    %33 = math.tanh %32 : vector<8x128xf32>
    %cst_17 = arith.constant 1.000000e+00 : f32
    %34 = vector.broadcast %cst_17 : f32 to vector<8x128xf32>
    %35 = arith.subf %34, %28 : vector<8x128xf32>
    %36 = arith.mulf %35, %33 : vector<8x128xf32>
    %37 = arith.mulf %28, %5 : vector<8x128xf32>
    %38 = arith.addf %36, %37 : vector<8x128xf32>
    %c0_18 = arith.constant 0 : index
    %c0_19 = arith.constant 0 : index
    %c0_20 = arith.constant 0 : index
    %39 = vector.load %arg11[%c0_18, %c0_19, %c0_20] : memref<2x8x128xf32, #tpu.memory_space<vmem>>, vector<1x8x128xf32>
    %40 = vector.shape_cast %39 : vector<1x8x128xf32> to vector<8x128xf32>
    %41 = vector.shape_cast %38 : vector<8x128xf32> to vector<1x8x128xf32>
    tpu.vector_store %arg11[%c0_18, %c0_19, %c0_20], %41 {strides = array<i32>} : memref<2x8x128xf32, #tpu.memory_space<vmem>>, vector<1x8x128xf32>,
    %42 = arith.truncf %38 : vector<8x128xf32> to vector<8x128xbf16>
    %c1 = arith.constant 1 : index
    %c0_21 = arith.constant 0 : index
    %c0_22 = arith.constant 0 : index
    %43 = vector.load %arg2[%c1, %c0_21, %c0_22] : memref<2x8x128xf32, #tpu.memory_space<vmem>>, vector<1x8x128xf32>
    %44 = vector.shape_cast %43 : vector<1x8x128xf32> to vector<8x128xf32>
    %45 = vector.broadcast %0 : vector<8x1xf32> to vector<8x128xf32>
    %46 = arith.mulf %44, %45 : vector<8x128xf32>
    %c0_23 = arith.constant 0 : index
    %c0_24 = arith.constant 0 : index
    %c0_25 = arith.constant 0 : index
    %47 = vector.load %arg5[%c0_23, %c0_24, %c0_25] : memref<1x128x512xbf16, #tpu.memory_space<vmem>>, vector<1x128x512xbf16>
    %48 = vector.shape_cast %47 : vector<1x128x512xbf16> to vector<128x512xbf16>
    %cst_26 = arith.constant dense<0.000000e+00> : vector<8x512xf32>
    %49 = tpu.matmul %42, %48, %cst_26 {dimension_numbers = #tpu.dot_dimension_numbers<[1], [0], [0], [1], [0, 0, 1, 1], [], []>} : vector<8x128xbf16>, vector<128x512xbf16>, vector<8x512xf32> -> vector<8x512xf32>
    %50 = arith.truncf %46 : vector<8x128xf32> to vector<8x128xbf16>
    %c1_27 = arith.constant 1 : index
    %c0_28 = arith.constant 0 : index
    %c0_29 = arith.constant 0 : index
    %51 = vector.load %arg6[%c1_27, %c0_28, %c0_29] : memref<2x128x512xbf16, #tpu.memory_space<vmem>>, vector<1x128x512xbf16>
    %52 = vector.shape_cast %51 : vector<1x128x512xbf16> to vector<128x512xbf16>
    %cst_30 = arith.constant dense<0.000000e+00> : vector<8x512xf32>
    %53 = tpu.matmul %50, %52, %cst_30 {dimension_numbers = #tpu.dot_dimension_numbers<[1], [0], [0], [1], [0, 0, 1, 1], [], []>} : vector<8x128xbf16>, vector<128x512xbf16>, vector<8x512xf32> -> vector<8x512xf32>
    %54 = arith.addf %49, %53 : vector<8x512xf32>
    %c1_31 = arith.constant 1 : index
    %c0_32 = arith.constant 0 : index
    %c0_33 = arith.constant 0 : index
    %55 = vector.load %arg7[%c1_31, %c0_32, %c0_33] : memref<2x1x512xf32, #tpu.memory_space<vmem>>, vector<1x1x512xf32>
    %56 = vector.shape_cast %55 : vector<1x1x512xf32> to vector<1x512xf32>
    %57 = vector.broadcast %56 : vector<1x512xf32> to vector<8x512xf32>
    %58 = arith.addf %54, %57 : vector<8x512xf32>
    %59 = vector.extract_strided_slice %58 {offsets = [0, 0], sizes = [8, 128], strides = [1, 1]} : vector<8x512xf32> to vector<8x128xf32>
    %60 = arith.negf %59 : vector<8x128xf32>
    %61 = math.exp %60 : vector<8x128xf32>
    %cst_34 = arith.constant 1.000000e+00 : f32
    %62 = vector.broadcast %cst_34 : f32 to vector<8x128xf32>
    %63 = arith.addf %62, %61 : vector<8x128xf32>
    %64 = arith.divf %62, %63 : vector<8x128xf32>
    %65 = vector.extract_strided_slice %58 {offsets = [0, 128], sizes = [8, 128], strides = [1, 1]} : vector<8x512xf32> to vector<8x128xf32>
    %66 = arith.negf %65 : vector<8x128xf32>
    %67 = math.exp %66 : vector<8x128xf32>
    %cst_35 = arith.constant 1.000000e+00 : f32
    %68 = vector.broadcast %cst_35 : f32 to vector<8x128xf32>
    %69 = arith.addf %68, %67 : vector<8x128xf32>
    %70 = arith.divf %68, %69 : vector<8x128xf32>
    %71 = vector.extract_strided_slice %58 {offsets = [0, 256], sizes = [8, 128], strides = [1, 1]} : vector<8x512xf32> to vector<8x128xf32>
    %72 = vector.extract_strided_slice %58 {offsets = [0, 384], sizes = [8, 128], strides = [1, 1]} : vector<8x512xf32> to vector<8x128xf32>
    %73 = arith.mulf %64, %72 : vector<8x128xf32>
    %74 = arith.addf %71, %73 : vector<8x128xf32>
    %75 = math.tanh %74 : vector<8x128xf32>
    %cst_36 = arith.constant 1.000000e+00 : f32
    %76 = vector.broadcast %cst_36 : f32 to vector<8x128xf32>
    %77 = arith.subf %76, %70 : vector<8x128xf32>
    %78 = arith.mulf %77, %75 : vector<8x128xf32>
    %79 = arith.mulf %70, %46 : vector<8x128xf32>
    %80 = arith.addf %78, %79 : vector<8x128xf32>
    %c1_37 = arith.constant 1 : index
    %c0_38 = arith.constant 0 : index
    %c0_39 = arith.constant 0 : index
    %81 = vector.load %arg11[%c1_37, %c0_38, %c0_39] : memref<2x8x128xf32, #tpu.memory_space<vmem>>, vector<1x8x128xf32>
    %82 = vector.shape_cast %81 : vector<1x8x128xf32> to vector<8x128xf32>
    %83 = vector.shape_cast %80 : vector<8x128xf32> to vector<1x8x128xf32>
    tpu.vector_store %arg11[%c1_37, %c0_38, %c0_39], %83 {strides = array<i32>} : memref<2x8x128xf32, #tpu.memory_space<vmem>>, vector<1x8x128xf32>,
    %84 = tpu.iota {dimensions = array<i32: 1>} : vector<1x128xi32>
    %c32_i32 = arith.constant 32 : i32
    %85 = vector.broadcast %c32_i32 : i32 to vector<1x128xi32>
    %86 = arith.cmpi slt, %84, %85 : vector<1x128xi32>
    %87 = arith.extui %86 : vector<1x128xi1> to vector<1x128xi32>
    %88 = arith.sitofp %87 : vector<1x128xi32> to vector<1x128xf32>
    %89 = vector.broadcast %88 : vector<1x128xf32> to vector<8x128xf32>
    %90 = arith.mulf %80, %89 : vector<8x128xf32>
    %cst_40 = arith.constant dense<0.000000e+00> : vector<8xf32>
    %91 = vector.multi_reduction <add>, %90, %cst_40 [1] : vector<8x128xf32> to vector<8xf32>
    %92 = vector.shape_cast %91 : vector<8xf32> to vector<8x1xf32>
    %cst_41 = arith.constant 3.125000e-02 : f32
    %93 = vector.broadcast %cst_41 : f32 to vector<8x1xf32>
    %94 = arith.mulf %92, %93 : vector<8x1xf32>
    %95 = vector.broadcast %94 : vector<8x1xf32> to vector<8x128xf32>
    %96 = arith.subf %90, %95 : vector<8x128xf32>
    %97 = vector.broadcast %88 : vector<1x128xf32> to vector<8x128xf32>
    %98 = arith.mulf %96, %97 : vector<8x128xf32>
    %99 = arith.mulf %98, %98 : vector<8x128xf32>
    %cst_42 = arith.constant dense<0.000000e+00> : vector<8xf32>
    %100 = vector.multi_reduction <add>, %99, %cst_42 [1] : vector<8x128xf32> to vector<8xf32>
    %101 = vector.shape_cast %100 : vector<8xf32> to vector<8x1xf32>
    %cst_43 = arith.constant 3.125000e-02 : f32
    %102 = vector.broadcast %cst_43 : f32 to vector<8x1xf32>
    %103 = arith.mulf %101, %102 : vector<8x1xf32>
    %cst_44 = arith.constant 9.99999974E-6 : f32
    %104 = vector.broadcast %cst_44 : f32 to vector<8x1xf32>
    %105 = arith.addf %103, %104 : vector<8x1xf32>
    %106 = math.rsqrt %105 : vector<8x1xf32>
    %107 = vector.broadcast %106 : vector<8x1xf32> to vector<8x128xf32>
    %108 = arith.mulf %98, %107 : vector<8x128xf32>
    %c0_45 = arith.constant 0 : index
    %c0_46 = arith.constant 0 : index
    %109 = vector.load %arg8[%c0_45, %c0_46] : memref<1x128xf32, #tpu.memory_space<vmem>>, vector<1x128xf32>
    %110 = vector.broadcast %109 : vector<1x128xf32> to vector<8x128xf32>
    %111 = arith.mulf %108, %110 : vector<8x128xf32>
    %c0_47 = arith.constant 0 : index
    %c0_48 = arith.constant 0 : index
    %112 = vector.load %arg9[%c0_47, %c0_48] : memref<1x128xf32, #tpu.memory_space<vmem>>, vector<1x128xf32>
    %113 = vector.broadcast %112 : vector<1x128xf32> to vector<8x128xf32>
    %114 = arith.addf %111, %113 : vector<8x128xf32>
    %c0_49 = arith.constant 0 : index
    %c0_50 = arith.constant 0 : index
    %115 = vector.load %arg10[%c0_49, %c0_50] : memref<8x128xf32, #tpu.memory_space<vmem>>, vector<8x128xf32>
    tpu.vector_store %arg10[%c0_49, %c0_50], %114 {strides = array<i32>} : memref<8x128xf32, #tpu.memory_space<vmem>>, vector<8x128xf32>,
    return
  }
  func.func @transform_0(%arg0: i32) -> (i32, i32) {
    %c0_i32 = arith.constant 0 : i32
    %c0_i32_0 = arith.constant 0 : i32
    return %arg0, %c0_i32 : i32, i32
  }
  func.func @transform_1(%arg0: i32) -> (i32, i32, i32) {
    %c0_i32 = arith.constant 0 : i32
    %c0_i32_0 = arith.constant 0 : i32
    %c0_i32_1 = arith.constant 0 : i32
    return %c0_i32, %arg0, %c0_i32_0 : i32, i32, i32
  }
  func.func @transform_2(%arg0: i32) -> (i32, i32) {
    %c0_i32 = arith.constant 0 : i32
    %c0_i32_0 = arith.constant 0 : i32
    return %arg0, %c0_i32 : i32, i32
  }
  func.func @transform_3(%arg0: i32) -> (i32, i32) {
    %c0_i32 = arith.constant 0 : i32
    %c0_i32_0 = arith.constant 0 : i32
    %c0_i32_1 = arith.constant 0 : i32
    return %c0_i32, %c0_i32_0 : i32, i32
  }
  func.func @transform_4(%arg0: i32) -> (i32, i32, i32) {
    %c0_i32 = arith.constant 0 : i32
    %c0_i32_0 = arith.constant 0 : i32
    %c0_i32_1 = arith.constant 0 : i32
    %c0_i32_2 = arith.constant 0 : i32
    return %c0_i32, %c0_i32_0, %c0_i32_1 : i32, i32, i32
  }
  func.func @transform_5(%arg0: i32) -> (i32, i32, i32) {
    %c0_i32 = arith.constant 0 : i32
    %c0_i32_0 = arith.constant 0 : i32
    %c0_i32_1 = arith.constant 0 : i32
    %c0_i32_2 = arith.constant 0 : i32
    return %c0_i32, %c0_i32_0, %c0_i32_1 : i32, i32, i32
  }
  func.func @transform_6(%arg0: i32) -> (i32, i32, i32) {
    %c0_i32 = arith.constant 0 : i32
    %c0_i32_0 = arith.constant 0 : i32
    %c0_i32_1 = arith.constant 0 : i32
    %c0_i32_2 = arith.constant 0 : i32
    return %c0_i32, %c0_i32_0, %c0_i32_1 : i32, i32, i32
  }
  func.func @transform_7(%arg0: i32) -> (i32, i32) {
    %c0_i32 = arith.constant 0 : i32
    %c0_i32_0 = arith.constant 0 : i32
    %c0_i32_1 = arith.constant 0 : i32
    return %c0_i32, %c0_i32_0 : i32, i32
  }
  func.func @transform_8(%arg0: i32) -> (i32, i32) {
    %c0_i32 = arith.constant 0 : i32
    %c0_i32_0 = arith.constant 0 : i32
    %c0_i32_1 = arith.constant 0 : i32
    return %c0_i32, %c0_i32_0 : i32, i32
  }
  func.func @transform_9(%arg0: i32) -> (i32, i32) {
    %c0_i32 = arith.constant 0 : i32
    %c0_i32_0 = arith.constant 0 : i32
    return %arg0, %c0_i32 : i32, i32
  }
  func.func @transform_10(%arg0: i32) -> (i32, i32, i32) {
    %c0_i32 = arith.constant 0 : i32
    %c0_i32_0 = arith.constant 0 : i32
    %c0_i32_1 = arith.constant 0 : i32
    return %c0_i32, %arg0, %c0_i32_0 : i32, i32, i32
  }
}

</mosaic_0001>

<llo_original>
// kernel: forward.1
$region0: #{forward.1}
  #allocation0 [shape = 'u32[]', space=smem, size = 0x4, offset = 0x4, fixed_abs, tag = 'smem constant byte address 0x4 - core index']
  #allocation1 [shape = 'u32[144,128]{1,0:T(1,128)}', space=vmem, size = 0x12000, scoped, tag = 'internal scratch']
  %s0 = inlined_call_operand.vmem [shape: bf16[8,128], index: 0, kind: input, shape index: {}]
  %s1 = inlined_call_operand.vmem [shape: f32[2,8,128], index: 1, kind: input, shape index: {}]
  %s2 = inlined_call_operand.vmem [shape: f32[8,1], index: 2, kind: input, shape index: {}]
  %s3 = inlined_call_operand.hbm [shape: bf16[128,512], index: 3, kind: input, shape index: {}]
  %s4 = inlined_call_operand.hbm [shape: bf16[1,128,512], index: 4, kind: input, shape index: {}]
  %s5 = inlined_call_operand.hbm [shape: bf16[2,128,512], index: 5, kind: input, shape index: {}]
  %s6 = inlined_call_operand.vmem [shape: f32[2,1,512], index: 6, kind: input, shape index: {}]
  %s7 = inlined_call_operand.vmem [shape: f32[1,128], index: 7, kind: input, shape index: {}]
  %s8 = inlined_call_operand.vmem [shape: f32[1,128], index: 8, kind: input, shape index: {}]
  %s9 = inlined_call_operand.hbm [shape: f32[8,128], index: 9, kind: output, shape index: {0}]
  %s10 = inlined_call_operand.vmem [shape: f32[2,8,128], index: 10, kind: output, shape index: {1}]
  %11 = xla_tuple %s9, %s10
  %s12 = sld [smem:[#allocation0]]
  $region66: #{forward.1} parent=0
    _
  %s14 = ssub.s32 1, %s12
  %s15 = scalar_select 0, %s14, %s12
  $region1: #{forward.1} parent=0
    #allocation2 [shape = 'u8[131072]{0}', space=vmem, size = 0x20000, scoped, tag = 'input window, operand 3, single buffered']
    #allocation3 [shape = 's32[1]{0}', space=sflag, size = 0x4, scoped, tag = 'scoped memory for forward.1']
    #allocation4 [shape = 's32[1]{0}', space=sflag, size = 0x4, scoped, tag = 'scoped memory for forward.1']
    #allocation5 [shape = 'u8[131072]{0}', space=vmem, size = 0x20000, scoped, tag = 'input window, operand 4, single buffered']
    #allocation6 [shape = 's32[1]{0}', space=sflag, size = 0x4, scoped, tag = 'scoped memory for forward.1']
    #allocation7 [shape = 'u8[262144]{0}', space=vmem, size = 0x40000, scoped, tag = 'input window, operand 5, single buffered']
    #allocation8 [shape = 'u8[4096]{0}', space=vmem, size = 0x1000, scoped, tag = 'output window, operand 0, single buffered']
    %16 = vsyncpa [#allocation3], 0
    %17 = vsyncpa [#allocation6], 0
    %18 = vsyncpa [#allocation4], 0
    // Predicated region
    $region2: #{forward.1} parent=1 // pred_check
      _
    $region3: #{forward.1} parent=1 // pred_check_branch
      %20 = sbr.rel (0) target = $region5
    $region4: #{forward.1} parent=1 // pred_region
      _
    $region5: #{forward.1} parent=1 // pred_fallthru
      _
    // Predicated region
    $region6: #{forward.1} parent=1 // pred_check
      _
    $region7: #{forward.1} parent=1 // pred_check_branch
      %22 = sbr.rel (0) target = $region9
    $region8: #{forward.1} parent=1 // pred_region
      _
    $region9: #{forward.1} parent=1 // pred_fallthru
      _
    // Predicated region
    $region10: #{forward.1} parent=1 // pred_check
      _
    $region11: #{forward.1} parent=1 // pred_check_branch
      %24 = sbr.rel (0) target = $region13
    $region12: #{forward.1} parent=1 // pred_region
      _
    $region13: #{forward.1} parent=1 // pred_fallthru
      _
    // Predicated region
    $region14: #{forward.1} parent=1 // pred_check
      _
    $region15: #{forward.1} parent=1 // pred_check_branch
      %26 = sbr.rel (0) target = $region17
    $region16: #{forward.1} parent=1 // pred_region
      %s28 = ssub.s32 4096, 4096
      %29 = vsyncadd [#allocation3], %s28
      %s30 = sshll.u32 [#allocation2], 4
      %s31 = int_to_ptr.vmem [resolvable:$true] %s30
      %36 = dma.hbm_to_vmem [thread:$0]  %s3, 4096, %s31, [#allocation3], 256, 256, 16
    $region17: #{forward.1} parent=1 // pred_fallthru
      _
    // Predicated region
    $region18: #{forward.1} parent=1 // pred_check
      _
    $region19: #{forward.1} parent=1 // pred_check_branch
      %38 = sbr.rel (0) target = $region21
    $region20: #{forward.1} parent=1 // pred_region
      %s40 = ssub.s32 4096, 4096
      %41 = vsyncadd [#allocation6], %s40
      %s42 = sshll.u32 [#allocation5], 4
      %s43 = int_to_ptr.vmem [resolvable:$true] %s42
      %48 = dma.hbm_to_vmem [thread:$0]  %s4, 4096, %s43, [#allocation6], 256, 256, 16
    $region21: #{forward.1} parent=1 // pred_fallthru
      _
    // Predicated region
    $region22: #{forward.1} parent=1 // pred_check
      _
    $region23: #{forward.1} parent=1 // pred_check_branch
      %50 = sbr.rel (0) target = $region25
    $region24: #{forward.1} parent=1 // pred_region
      %s52 = ssub.s32 8192, 8192
      %53 = vsyncadd [#allocation6], %s52
      %s54 = sshll.u32 [#allocation7], 4
      %s55 = int_to_ptr.vmem [resolvable:$true] %s54
      %60 = dma.hbm_to_vmem [thread:$0]  %s5, 8192, %s55, [#allocation6], 256, 256, 16
    $region25: #{forward.1} parent=1 // pred_fallthru
      _
    // Predicated region
    $region26: #{forward.1} parent=1 // pred_check
      _
    $region27: #{forward.1} parent=1 // pred_check_branch
      %62 = sbr.rel (0) target = $region29
    $region28: #{forward.1} parent=1 // pred_region
      _
    $region29: #{forward.1} parent=1 // pred_fallthru
      _
    // Predicated region
    $region30: #{forward.1} parent=1 // pred_check
      _
    $region31: #{forward.1} parent=1 // pred_check_branch
      %64 = sbr.rel (0) target = $region33
    $region32: #{forward.1} parent=1 // pred_region
      _
    $region33: #{forward.1} parent=1 // pred_fallthru
      _
    // Predicated region
    $region34: #{forward.1} parent=1 // pred_check
      _
    $region35: #{forward.1} parent=1 // pred_check_branch
      %66 = sbr.rel (0) target = $region37
    $region36: #{forward.1} parent=1 // pred_region
      _
    $region37: #{forward.1} parent=1 // pred_fallthru
      _
    // Predicated region
    $region38: #{forward.1} parent=1 // pred_check
      _
    $region39: #{forward.1} parent=1 // pred_check_branch
      %68 = sbr.rel (0) target = $region41
    $region40: #{forward.1} parent=1 // pred_region
      %69 = dma.done [#allocation3], 4096
    $region41: #{forward.1} parent=1 // pred_fallthru
      _
    // Predicated region
    $region42: #{forward.1} parent=1 // pred_check
      _
    $region43: #{forward.1} parent=1 // pred_check_branch
      %71 = sbr.rel (0) target = $region45
    $region44: #{forward.1} parent=1 // pred_region
      %72 = dma.done [#allocation6], 4096
    $region45: #{forward.1} parent=1 // pred_fallthru
      _
    // Predicated region
    $region46: #{forward.1} parent=1 // pred_check
      _
    $region47: #{forward.1} parent=1 // pred_check_branch
      %74 = sbr.rel (0) target = $region49
    $region48: #{forward.1} parent=1 // pred_region
      %75 = dma.done [#allocation6], 8192
    $region49: #{forward.1} parent=1 // pred_fallthru
      _
    %v77 = vld [vmem:[%s2] sm:$0xff]
    %v78 = vld [vmem:[%s0] sm:$0xf]
    %v79 = vld [vmem:[%s1] sm:$0xff]
    %81 = vset.pattern.permute.xlu0 0
    %82 = vperm.xlu0 %81, %v77
    %v83 = vpop.permute.xlu0 %82
    %v85 = vmul.f32 %v79, %v83
    %v86 = vld [vmem:[#allocation2] sm:$0xff]
    %v87 = vld [vmem:[#allocation2 + $0x8] sm:$0xff]
    %v88 = vld [vmem:[#allocation2 + $0x10] sm:$0xff]
    %v89 = vld [vmem:[#allocation2 + $0x18] sm:$0xff]
    %v90 = vld [vmem:[#allocation2 + $0x20] sm:$0xff]
    %v91 = vld [vmem:[#allocation2 + $0x28] sm:$0xff]
    %v92 = vld [vmem:[#allocation2 + $0x30] sm:$0xff]
    %v93 = vld [vmem:[#allocation2 + $0x38] sm:$0xff]
    %v94 = vld [vmem:[#allocation2 + $0x40] sm:$0xff]
    %v95 = vld [vmem:[#allocation2 + $0x48] sm:$0xff]
    %v96 = vld [vmem:[#allocation2 + $0x50] sm:$0xff]
    %v97 = vld [vmem:[#allocation2 + $0x58] sm:$0xff]
    %v98 = vld [vmem:[#allocation2 + $0x60] sm:$0xff]
    %v99 = vld [vmem:[#allocation2 + $0x68] sm:$0xff]
    %v100 = vld [vmem:[#allocation2 + $0x70] sm:$0xff]
    %v101 = vld [vmem:[#allocation2 + $0x78] sm:$0xff]
    %v102 = vld [vmem:[#allocation2 + $0x80] sm:$0xff]
    %v103 = vld [vmem:[#allocation2 + $0x88] sm:$0xff]
    %v104 = vld [vmem:[#allocation2 + $0x90] sm:$0xff]
    %v105 = vld [vmem:[#allocation2 + $0x98] sm:$0xff]
    %v106 = vld [vmem:[#allocation2 + $0xa0] sm:$0xff]
    %v107 = vld [vmem:[#allocation2 + $0xa8] sm:$0xff]
    %v108 = vld [vmem:[#allocation2 + $0xb0] sm:$0xff]
    %v109 = vld [vmem:[#allocation2 + $0xb8] sm:$0xff]
    %v110 = vld [vmem:[#allocation2 + $0xc0] sm:$0xff]
    %v111 = vld [vmem:[#allocation2 + $0xc8] sm:$0xff]
    %v112 = vld [vmem:[#allocation2 + $0xd0] sm:$0xff]
    %v113 = vld [vmem:[#allocation2 + $0xd8] sm:$0xff]
    %v114 = vld [vmem:[#allocation2 + $0xe0] sm:$0xff]
    %v115 = vld [vmem:[#allocation2 + $0xe8] sm:$0xff]
    %v116 = vld [vmem:[#allocation2 + $0xf0] sm:$0xff]
    %v117 = vld [vmem:[#allocation2 + $0xf8] sm:$0xff]
    %v118 = vpack.c.bf16 %v85, %v85
    %v119 = vld [vmem:[#allocation7] sm:$0xff]
    %v120 = vld [vmem:[#allocation7 + $0x8] sm:$0xff]
    %v121 = vld [vmem:[#allocation7 + $0x10] sm:$0xff]
    %v122 = vld [vmem:[#allocation7 + $0x18] sm:$0xff]
    %v123 = vld [vmem:[#allocation7 + $0x20] sm:$0xff]
    %v124 = vld [vmem:[#allocation7 + $0x28] sm:$0xff]
    %v125 = vld [vmem:[#allocation7 + $0x30] sm:$0xff]
    %v126 = vld [vmem:[#allocation7 + $0x38] sm:$0xff]
    %v127 = vld [vmem:[#allocation7 + $0x40] sm:$0xff]
    %v128 = vld [vmem:[#allocation7 + $0x48] sm:$0xff]
    %v129 = vld [vmem:[#allocation7 + $0x50] sm:$0xff]
    %v130 = vld [vmem:[#allocation7 + $0x58] sm:$0xff]
    %v131 = vld [vmem:[#allocation7 + $0x60] sm:$0xff]
    %v132 = vld [vmem:[#allocation7 + $0x68] sm:$0xff]
    %v133 = vld [vmem:[#allocation7 + $0x70] sm:$0xff]
    %v134 = vld [vmem:[#allocation7 + $0x78] sm:$0xff]
    %v135 = vld [vmem:[#allocation7 + $0x80] sm:$0xff]
    %v136 = vld [vmem:[#allocation7 + $0x88] sm:$0xff]
    %v137 = vld [vmem:[#allocation7 + $0x90] sm:$0xff]
    %v138 = vld [vmem:[#allocation7 + $0x98] sm:$0xff]
    %v139 = vld [vmem:[#allocation7 + $0xa0] sm:$0xff]
    %v140 = vld [vmem:[#allocation7 + $0xa8] sm:$0xff]
    %v141 = vld [vmem:[#allocation7 + $0xb0] sm:$0xff]
    %v142 = vld [vmem:[#allocation7 + $0xb8] sm:$0xff]
    %v143 = vld [vmem:[#allocation7 + $0xc0] sm:$0xff]
    %v144 = vld [vmem:[#allocation7 + $0xc8] sm:$0xff]
    %v145 = vld [vmem:[#allocation7 + $0xd0] sm:$0xff]
    %v146 = vld [vmem:[#allocation7 + $0xd8] sm:$0xff]
    %v147 = vld [vmem:[#allocation7 + $0xe0] sm:$0xff]
    %v148 = vld [vmem:[#allocation7 + $0xe8] sm:$0xff]
    %v149 = vld [vmem:[#allocation7 + $0xf0] sm:$0xff]
    %v150 = vld [vmem:[#allocation7 + $0xf8] sm:$0xff]
    %v183 = vunpack.c.l.b16 %v119
    %v184 = vunpack.c.h.b16 %v119
    %v185 = vunpack.c.l.b16 %v120
    %v186 = vunpack.c.h.b16 %v120
    %v187 = vunpack.c.l.b16 %v121
    %v188 = vunpack.c.h.b16 %v121
    %v189 = vunpack.c.l.b16 %v122
    %v190 = vunpack.c.h.b16 %v122
    %v191 = vunpack.c.l.b16 %v123
    %v192 = vunpack.c.h.b16 %v123
    %v193 = vunpack.c.l.b16 %v124
    %v194 = vunpack.c.h.b16 %v124
    %v195 = vunpack.c.l.b16 %v125
    %v196 = vunpack.c.h.b16 %v125
    %v197 = vunpack.c.l.b16 %v126
    %v198 = vunpack.c.h.b16 %v126
    %v199 = vunpack.c.l.b16 %v127
    %v200 = vunpack.c.h.b16 %v127
    %v201 = vunpack.c.l.b16 %v128
    %v202 = vunpack.c.h.b16 %v128
    %v203 = vunpack.c.l.b16 %v129
    %v204 = vunpack.c.h.b16 %v129
    %v205 = vunpack.c.l.b16 %v130
    %v206 = vunpack.c.h.b16 %v130
    %v207 = vunpack.c.l.b16 %v131
    %v208 = vunpack.c.h.b16 %v131
    %v209 = vunpack.c.l.b16 %v132
    %v210 = vunpack.c.h.b16 %v132
    %v211 = vunpack.c.l.b16 %v133
    %v212 = vunpack.c.h.b16 %v133
    %v213 = vunpack.c.l.b16 %v134
    %v214 = vunpack.c.h.b16 %v134
    %v215 = vunpack.c.l.b16 %v135
    %v216 = vunpack.c.h.b16 %v135
    %v217 = vunpack.c.l.b16 %v136
    %v218 = vunpack.c.h.b16 %v136
    %v219 = vunpack.c.l.b16 %v137
    %v220 = vunpack.c.h.b16 %v137
    %v221 = vunpack.c.l.b16 %v138
    %v222 = vunpack.c.h.b16 %v138
    %v223 = vunpack.c.l.b16 %v139
    %v224 = vunpack.c.h.b16 %v139
    %v225 = vunpack.c.l.b16 %v140
    %v226 = vunpack.c.h.b16 %v140
    %v227 = vunpack.c.l.b16 %v141
    %v228 = vunpack.c.h.b16 %v141
    %v229 = vunpack.c.l.b16 %v142
    %v230 = vunpack.c.h.b16 %v142
    %v231 = vunpack.c.l.b16 %v143
    %v232 = vunpack.c.h.b16 %v143
    %v233 = vunpack.c.l.b16 %v144
    %v234 = vunpack.c.h.b16 %v144
    %v235 = vunpack.c.l.b16 %v145
    %v236 = vunpack.c.h.b16 %v145
    %v237 = vunpack.c.l.b16 %v146
    %v238 = vunpack.c.h.b16 %v146
    %v239 = vunpack.c.l.b16 %v147
    %v240 = vunpack.c.h.b16 %v147
    %v241 = vunpack.c.l.b16 %v148
    %v242 = vunpack.c.h.b16 %v148
    %v243 = vunpack.c.l.b16 %v149
    %v244 = vunpack.c.h.b16 %v149
    %v245 = vunpack.c.l.b16 %v150
    %v246 = vunpack.c.h.b16 %v150
    %v247 = vpack.c.b16 %v187, %v183
    %v248 = vpack.c.b16 %v188, %v184
    %v249 = vpack.c.b16 %v189, %v185
    %v250 = vpack.c.b16 %v190, %v186
    %v251 = vpack.c.b16 %v195, %v191
    %v252 = vpack.c.b16 %v196, %v192
    %v253 = vpack.c.b16 %v197, %v193
    %v254 = vpack.c.b16 %v198, %v194
    %v255 = vpack.c.b16 %v203, %v199
    %v256 = vpack.c.b16 %v204, %v200
    %v257 = vpack.c.b16 %v205, %v201
    %v258 = vpack.c.b16 %v206, %v202
    %v259 = vpack.c.b16 %v211, %v207
    %v260 = vpack.c.b16 %v212, %v208
    %v261 = vpack.c.b16 %v213, %v209
    %v262 = vpack.c.b16 %v214, %v210
    %v263 = vpack.c.b16 %v219, %v215
    %v264 = vpack.c.b16 %v220, %v216
    %v265 = vpack.c.b16 %v221, %v217
    %v266 = vpack.c.b16 %v222, %v218
    %v267 = vpack.c.b16 %v227, %v223
    %v268 = vpack.c.b16 %v228, %v224
    %v269 = vpack.c.b16 %v229, %v225
    %v270 = vpack.c.b16 %v230, %v226
    %v271 = vpack.c.b16 %v235, %v231
    %v272 = vpack.c.b16 %v236, %v232
    %v273 = vpack.c.b16 %v237, %v233
    %v274 = vpack.c.b16 %v238, %v234
    %v275 = vpack.c.b16 %v243, %v239
    %v276 = vpack.c.b16 %v244, %v240
    %v277 = vpack.c.b16 %v245, %v241
    %v278 = vpack.c.b16 %v246, %v242
    %311 = vmatprep.subr.bf16.mxu0 %v248
    %312 = vmatpush1.bf16.msra.mxu0 %v247
    %313 = vmatprep.subr.bf16.mxu0 %v252
    %314 = vmatpush1.bf16.msra.mxu0 %v251
    %315 = vmatprep.subr.bf16.mxu0 %v256
    %316 = vmatpush1.bf16.msra.mxu0 %v255
    %317 = vmatprep.subr.bf16.mxu0 %v260
    %318 = vmatpush1.bf16.msra.mxu0 %v259
    %319 = vmatprep.subr.bf16.mxu0 %v264
    %320 = vmatpush1.bf16.msra.mxu0 %v263
    %321 = vmatprep.subr.bf16.mxu0 %v268
    %322 = vmatpush1.bf16.msra.mxu0 %v267
    %323 = vmatprep.subr.bf16.mxu0 %v272
    %324 = vmatpush1.bf16.msra.mxu0 %v271
    %325 = vmatprep.subr.bf16.mxu0 %v276
    %326 = vmatpush1.bf16.msra.mxu0 %v275
    %327 = vmatprep.subr.bf16.mxu0 0
    %328 = vmatpush1.bf16.msra.mxu0 0
    %329 = vmatprep.subr.bf16.mxu0 0
    %330 = vmatpush1.bf16.msra.mxu0 0
    %331 = vmatprep.subr.bf16.mxu0 0
    %332 = vmatpush1.bf16.msra.mxu0 0
    %333 = vmatprep.subr.bf16.mxu0 0
    %334 = vmatpush1.bf16.msra.mxu0 0
    %335 = vmatprep.subr.bf16.mxu0 0
    %336 = vmatpush1.bf16.msra.mxu0 0
    %337 = vmatprep.subr.bf16.mxu0 0
    %338 = vmatpush1.bf16.msra.mxu0 0
    %339 = vmatprep.subr.bf16.mxu0 0
    %340 = vmatpush1.bf16.msra.mxu0 0
    %341 = vmatprep.subr.bf16.mxu0 0
    %342 = vmatpush1.bf16.msra.mxu0 0
    %343 = vmatprep.mubr.bf16.mxu0 0
    %344 = vmatmul.mubr.bf16.gmra.mrb[0].mxu0 %v118
    %v345 = vpop.f32.mrb[0].mxu0
    %v346 = vadd.f32 0.0, %v345
    %v347 = vpop.f32.mrb[0].mxu0
    %v348 = vadd.f32 0.0, %v347
    %v349 = vpop.f32.mrb[0].mxu0
    %v350 = vpop.f32.mrb[0].mxu0
    %351 = vdwg.mxu0
    %352 = vmatprep.subr.bf16.mxu0 %v250
    %353 = vmatpush1.bf16.msra.mxu0 %v249
    %354 = vmatprep.subr.bf16.mxu0 %v254
    %355 = vmatpush1.bf16.msra.mxu0 %v253
    %356 = vmatprep.subr.bf16.mxu0 %v258
    %357 = vmatpush1.bf16.msra.mxu0 %v257
    %358 = vmatprep.subr.bf16.mxu0 %v262
    %359 = vmatpush1.bf16.msra.mxu0 %v261
    %360 = vmatprep.subr.bf16.mxu0 %v266
    %361 = vmatpush1.bf16.msra.mxu0 %v265
    %362 = vmatprep.subr.bf16.mxu0 %v270
    %363 = vmatpush1.bf16.msra.mxu0 %v269
    %364 = vmatprep.subr.bf16.mxu0 %v274
    %365 = vmatpush1.bf16.msra.mxu0 %v273
    %366 = vmatprep.subr.bf16.mxu0 %v278
    %367 = vmatpush1.bf16.msra.mxu0 %v277
    %368 = vmatprep.subr.bf16.mxu0 0
    %369 = vmatpush1.bf16.msra.mxu0 0
    %370 = vmatprep.subr.bf16.mxu0 0
    %371 = vmatpush1.bf16.msra.mxu0 0
    %372 = vmatprep.subr.bf16.mxu0 0
    %373 = vmatpush1.bf16.msra.mxu0 0
    %374 = vmatprep.subr.bf16.mxu0 0
    %375 = vmatpush1.bf16.msra.mxu0 0
    %376 = vmatprep.subr.bf16.mxu0 0
    %377 = vmatpush1.bf16.msra.mxu0 0
    %378 = vmatprep.subr.bf16.mxu0 0
    %379 = vmatpush1.bf16.msra.mxu0 0
    %380 = vmatprep.subr.bf16.mxu0 0
    %381 = vmatpush1.bf16.msra.mxu0 0
    %382 = vmatprep.subr.bf16.mxu0 0
    %383 = vmatpush1.bf16.msra.mxu0 0
    %384 = vmatprep.mubr.bf16.mxu0 0
    %385 = vmatmul.mubr.bf16.gmra.mrb[0].mxu0 %v118
    %v386 = vpop.f32.mrb[0].mxu0
    %v387 = vadd.f32 0.0, %v386
    %v388 = vpop.f32.mrb[0].mxu0
    %v389 = vadd.f32 0.0, %v388
    %v390 = vpop.f32.mrb[0].mxu0
    %v391 = vpop.f32.mrb[0].mxu0
    %392 = vdwg.mxu0
    %v425 = vunpack.c.l.b16 %v86
    %v426 = vunpack.c.h.b16 %v86
    %v427 = vunpack.c.l.b16 %v87
    %v428 = vunpack.c.h.b16 %v87
    %v429 = vunpack.c.l.b16 %v88
    %v430 = vunpack.c.h.b16 %v88
    %v431 = vunpack.c.l.b16 %v89
    %v432 = vunpack.c.h.b16 %v89
    %v433 = vunpack.c.l.b16 %v90
    %v434 = vunpack.c.h.b16 %v90
    %v435 = vunpack.c.l.b16 %v91
    %v436 = vunpack.c.h.b16 %v91
    %v437 = vunpack.c.l.b16 %v92
    %v438 = vunpack.c.h.b16 %v92
    %v439 = vunpack.c.l.b16 %v93
    %v440 = vunpack.c.h.b16 %v93
    %v441 = vunpack.c.l.b16 %v94
    %v442 = vunpack.c.h.b16 %v94
    %v443 = vunpack.c.l.b16 %v95
    %v444 = vunpack.c.h.b16 %v95
    %v445 = vunpack.c.l.b16 %v96
    %v446 = vunpack.c.h.b16 %v96
    %v447 = vunpack.c.l.b16 %v97
    %v448 = vunpack.c.h.b16 %v97
    %v449 = vunpack.c.l.b16 %v98
    %v450 = vunpack.c.h.b16 %v98
    %v451 = vunpack.c.l.b16 %v99
    %v452 = vunpack.c.h.b16 %v99
    %v453 = vunpack.c.l.b16 %v100
    %v454 = vunpack.c.h.b16 %v100
    %v455 = vunpack.c.l.b16 %v101
    %v456 = vunpack.c.h.b16 %v101
    %v457 = vunpack.c.l.b16 %v102
    %v458 = vunpack.c.h.b16 %v102
    %v459 = vunpack.c.l.b16 %v103
    %v460 = vunpack.c.h.b16 %v103
    %v461 = vunpack.c.l.b16 %v104
    %v462 = vunpack.c.h.b16 %v104
    %v463 = vunpack.c.l.b16 %v105
    %v464 = vunpack.c.h.b16 %v105
    %v465 = vunpack.c.l.b16 %v106
    %v466 = vunpack.c.h.b16 %v106
    %v467 = vunpack.c.l.b16 %v107
    %v468 = vunpack.c.h.b16 %v107
    %v469 = vunpack.c.l.b16 %v108
    %v470 = vunpack.c.h.b16 %v108
    %v471 = vunpack.c.l.b16 %v109
    %v472 = vunpack.c.h.b16 %v109
    %v473 = vunpack.c.l.b16 %v110
    %v474 = vunpack.c.h.b16 %v110
    %v475 = vunpack.c.l.b16 %v111
    %v476 = vunpack.c.h.b16 %v111
    %v477 = vunpack.c.l.b16 %v112
    %v478 = vunpack.c.h.b16 %v112
    %v479 = vunpack.c.l.b16 %v113
    %v480 = vunpack.c.h.b16 %v113
    %v481 = vunpack.c.l.b16 %v114
    %v482 = vunpack.c.h.b16 %v114
    %v483 = vunpack.c.l.b16 %v115
    %v484 = vunpack.c.h.b16 %v115
    %v485 = vunpack.c.l.b16 %v116
    %v486 = vunpack.c.h.b16 %v116
    %v487 = vunpack.c.l.b16 %v117
    %v488 = vunpack.c.h.b16 %v117
    %v489 = vpack.c.b16 %v429, %v425
    %v490 = vpack.c.b16 %v430, %v426
    %v491 = vpack.c.b16 %v431, %v427
    %v492 = vpack.c.b16 %v432, %v428
    %v493 = vpack.c.b16 %v437, %v433
    %v494 = vpack.c.b16 %v438, %v434
    %v495 = vpack.c.b16 %v439, %v435
    %v496 = vpack.c.b16 %v440, %v436
    %v497 = vpack.c.b16 %v445, %v441
    %v498 = vpack.c.b16 %v446, %v442
    %v499 = vpack.c.b16 %v447, %v443
    %v500 = vpack.c.b16 %v448, %v444
    %v501 = vpack.c.b16 %v453, %v449
    %v502 = vpack.c.b16 %v454, %v450
    %v503 = vpack.c.b16 %v455, %v451
    %v504 = vpack.c.b16 %v456, %v452
    %v505 = vpack.c.b16 %v461, %v457
    %v506 = vpack.c.b16 %v462, %v458
    %v507 = vpack.c.b16 %v463, %v459
    %v508 = vpack.c.b16 %v464, %v460
    %v509 = vpack.c.b16 %v469, %v465
    %v510 = vpack.c.b16 %v470, %v466
    %v511 = vpack.c.b16 %v471, %v467
    %v512 = vpack.c.b16 %v472, %v468
    %v513 = vpack.c.b16 %v477, %v473
    %v514 = vpack.c.b16 %v478, %v474
    %v515 = vpack.c.b16 %v479, %v475
    %v516 = vpack.c.b16 %v480, %v476
    %v517 = vpack.c.b16 %v485, %v481
    %v518 = vpack.c.b16 %v486, %v482
    %v519 = vpack.c.b16 %v487, %v483
    %v520 = vpack.c.b16 %v488, %v484
    %553 = vmatprep.subr.bf16.mxu0 %v490
    %554 = vmatpush1.bf16.msra.mxu0 %v489
    %555 = vmatprep.subr.bf16.mxu0 %v494
    %556 = vmatpush1.bf16.msra.mxu0 %v493
    %557 = vmatprep.subr.bf16.mxu0 %v498
    %558 = vmatpush1.bf16.msra.mxu0 %v497
    %559 = vmatprep.subr.bf16.mxu0 %v502
    %560 = vmatpush1.bf16.msra.mxu0 %v501
    %561 = vmatprep.subr.bf16.mxu0 %v506
    %562 = vmatpush1.bf16.msra.mxu0 %v505
    %563 = vmatprep.subr.bf16.mxu0 %v510
    %564 = vmatpush1.bf16.msra.mxu0 %v509
    %565 = vmatprep.subr.bf16.mxu0 %v514
    %566 = vmatpush1.bf16.msra.mxu0 %v513
    %567 = vmatprep.subr.bf16.mxu0 %v518
    %568 = vmatpush1.bf16.msra.mxu0 %v517
    %569 = vmatprep.subr.bf16.mxu0 0
    %570 = vmatpush1.bf16.msra.mxu0 0
    %571 = vmatprep.subr.bf16.mxu0 0
    %572 = vmatpush1.bf16.msra.mxu0 0
    %573 = vmatprep.subr.bf16.mxu0 0
    %574 = vmatpush1.bf16.msra.mxu0 0
    %575 = vmatprep.subr.bf16.mxu0 0
    %576 = vmatpush1.bf16.msra.mxu0 0
    %577 = vmatprep.subr.bf16.mxu0 0
    %578 = vmatpush1.bf16.msra.mxu0 0
    %579 = vmatprep.subr.bf16.mxu0 0
    %580 = vmatpush1.bf16.msra.mxu0 0
    %581 = vmatprep.subr.bf16.mxu0 0
    %582 = vmatpush1.bf16.msra.mxu0 0
    %583 = vmatprep.subr.bf16.mxu0 0
    %584 = vmatpush1.bf16.msra.mxu0 0
    %585 = vmatprep.mubr.bf16.mxu0 0
    %586 = vmatmul.mubr.bf16.gmra.mrb[0].mxu0 %v78
    %v587 = vpop.f32.mrb[0].mxu0
    %v588 = vadd.f32 %v346, %v587
    %v589 = vpop.f32.mrb[0].mxu0
    %v590 = vadd.f32 %v348, %v589
    %v591 = vpop.f32.mrb[0].mxu0
    %v592 = vpop.f32.mrb[0].mxu0
    %593 = vdwg.mxu0
    %594 = vmatprep.subr.bf16.mxu0 %v492
    %595 = vmatpush1.bf16.msra.mxu0 %v491
    %596 = vmatprep.subr.bf16.mxu0 %v496
    %597 = vmatpush1.bf16.msra.mxu0 %v495
    %598 = vmatprep.subr.bf16.mxu0 %v500
    %599 = vmatpush1.bf16.msra.mxu0 %v499
    %600 = vmatprep.subr.bf16.mxu0 %v504
    %601 = vmatpush1.bf16.msra.mxu0 %v503
    %602 = vmatprep.subr.bf16.mxu0 %v508
    %603 = vmatpush1.bf16.msra.mxu0 %v507
    %604 = vmatprep.subr.bf16.mxu0 %v512
    %605 = vmatpush1.bf16.msra.mxu0 %v511
    %606 = vmatprep.subr.bf16.mxu0 %v516
    %607 = vmatpush1.bf16.msra.mxu0 %v515
    %608 = vmatprep.subr.bf16.mxu0 %v520
    %609 = vmatpush1.bf16.msra.mxu0 %v519
    %610 = vmatprep.subr.bf16.mxu0 0
    %611 = vmatpush1.bf16.msra.mxu0 0
    %612 = vmatprep.subr.bf16.mxu0 0
    %613 = vmatpush1.bf16.msra.mxu0 0
    %614 = vmatprep.subr.bf16.mxu0 0
    %615 = vmatpush1.bf16.msra.mxu0 0
    %616 = vmatprep.subr.bf16.mxu0 0
    %617 = vmatpush1.bf16.msra.mxu0 0
    %618 = vmatprep.subr.bf16.mxu0 0
    %619 = vmatpush1.bf16.msra.mxu0 0
    %620 = vmatprep.subr.bf16.mxu0 0
    %621 = vmatpush1.bf16.msra.mxu0 0
    %622 = vmatprep.subr.bf16.mxu0 0
    %623 = vmatpush1.bf16.msra.mxu0 0
    %624 = vmatprep.subr.bf16.mxu0 0
    %625 = vmatpush1.bf16.msra.mxu0 0
    %626 = vmatprep.mubr.bf16.mxu0 0
    %627 = vmatmul.mubr.bf16.gmra.mrb[0].mxu0 %v78
    %v628 = vpop.f32.mrb[0].mxu0
    %v629 = vadd.f32 %v387, %v628
    %v630 = vpop.f32.mrb[0].mxu0
    %v631 = vadd.f32 %v389, %v630
    %v632 = vpop.f32.mrb[0].mxu0
    %v633 = vpop.f32.mrb[0].mxu0
    %634 = vdwg.mxu0
    %v635 = vld [vmem:[%s6] sm:$0xf]
    %v637 = vlaneseq
    %v638 = vshrl.u32 %v637, 7
    %v639 = vsub.s32 0, %v638
    %v640 = vrot.slane %v635, %v639
    %v641 = vlaneseq
    %v642 = vshrl.u32 %v641, 7
    %v643 = vsub.s32 1, %v642
    %v644 = vrot.slane %v635, %v643
    %v645 = vlaneseq
    %v646 = vshrl.u32 %v645, 7
    %v647 = vsub.s32 2, %v646
    %v648 = vrot.slane %v635, %v647
    %v649 = vlaneseq
    %v650 = vshrl.u32 %v649, 7
    %v651 = vsub.s32 3, %v650
    %v652 = vrot.slane %v635, %v651
    %v657 = vadd.f32 %v588, %v640
    %v658 = vadd.f32 %v590, %v644
    %v659 = vadd.f32 %v629, %v648
    %v660 = vadd.f32 %v631, %v652
    %v661 = vxor.u32 %v657, 2147483648
    %v662 = vmul.f32 %v661, 1.442695
    %v663 = vpow.pop %v662
    %v664 = vadd.f32 %v663, 1.0
    %v665 = vrcp.pop %v664
    %v666 = vmul.f32 1.0, %v665
    %v667 = vxor.u32 %v658, 2147483648
    %v668 = vmul.f32 %v667, 1.442695
    %v669 = vpow.pop %v668
    %v670 = vadd.f32 %v669, 1.0
    %v671 = vrcp.pop %v670
    %v672 = vmul.f32 1.0, %v671
    %v673 = vmul.f32 %v666, %v660
    %v674 = vadd.f32 %v659, %v673
    %v675 = vtanh.pop %v674
    %v676 = vsub.f32 1.0, %v672
    %v677 = vmul.f32 %v676, %v675
    %v678 = vmul.f32 %v672, %v85
    %v679 = vadd.f32 %v677, %v678
    %680 = vst [vmem:[%s10] sm:$0xff] %v679
    %v681 = vpack.c.bf16 %v679, %v679
    %s682 = scalar_lea.vmem %s1, 8
    %v683 = vld [vmem:[%s682] sm:$0xff]
    %v684 = vmul.f32 %v683, %v83
    %v685 = vld [vmem:[#allocation5] sm:$0xff]
    %v686 = vld [vmem:[#allocation5 + $0x8] sm:$0xff]
    %v687 = vld [vmem:[#allocation5 + $0x10] sm:$0xff]
    %v688 = vld [vmem:[#allocation5 + $0x18] sm:$0xff]
    %v689 = vld [vmem:[#allocation5 + $0x20] sm:$0xff]
    %v690 = vld [vmem:[#allocation5 + $0x28] sm:$0xff]
    %v691 = vld [vmem:[#allocation5 + $0x30] sm:$0xff]
    %v692 = vld [vmem:[#allocation5 + $0x38] sm:$0xff]
    %v693 = vld [vmem:[#allocation5 + $0x40] sm:$0xff]
    %v694 = vld [vmem:[#allocation5 + $0x48] sm:$0xff]
    %v695 = vld [vmem:[#allocation5 + $0x50] sm:$0xff]
    %v696 = vld [vmem:[#allocation5 + $0x58] sm:$0xff]
    %v697 = vld [vmem:[#allocation5 + $0x60] sm:$0xff]
    %v698 = vld [vmem:[#allocation5 + $0x68] sm:$0xff]
    %v699 = vld [vmem:[#allocation5 + $0x70] sm:$0xff]
    %v700 = vld [vmem:[#allocation5 + $0x78] sm:$0xff]
    %v701 = vld [vmem:[#allocation5 + $0x80] sm:$0xff]
    %v702 = vld [vmem:[#allocation5 + $0x88] sm:$0xff]
    %v703 = vld [vmem:[#allocation5 + $0x90] sm:$0xff]
    %v704 = vld [vmem:[#allocation5 + $0x98] sm:$0xff]
    %v705 = vld [vmem:[#allocation5 + $0xa0] sm:$0xff]
    %v706 = vld [vmem:[#allocation5 + $0xa8] sm:$0xff]
    %v707 = vld [vmem:[#allocation5 + $0xb0] sm:$0xff]
    %v708 = vld [vmem:[#allocation5 + $0xb8] sm:$0xff]
    %v709 = vld [vmem:[#allocation5 + $0xc0] sm:$0xff]
    %v710 = vld [vmem:[#allocation5 + $0xc8] sm:$0xff]
    %v711 = vld [vmem:[#allocation5 + $0xd0] sm:$0xff]
    %v712 = vld [vmem:[#allocation5 + $0xd8] sm:$0xff]
    %v713 = vld [vmem:[#allocation5 + $0xe0] sm:$0xff]
    %v714 = vld [vmem:[#allocation5 + $0xe8] sm:$0xff]
    %v715 = vld [vmem:[#allocation5 + $0xf0] sm:$0xff]
    %v716 = vld [vmem:[#allocation5 + $0xf8] sm:$0xff]
    %v717 = vpack.c.bf16 %v684, %v684
    %s718 = scalar_lea.vmem [#allocation7], 256
    %v719 = vld [vmem:[%s718] sm:$0xff]
    %v720 = vld [vmem:[%s718 + $0x8] sm:$0xff]
    %v721 = vld [vmem:[%s718 + $0x10] sm:$0xff]
    %v722 = vld [vmem:[%s718 + $0x18] sm:$0xff]
    %v723 = vld [vmem:[%s718 + $0x20] sm:$0xff]
    %v724 = vld [vmem:[%s718 + $0x28] sm:$0xff]
    %v725 = vld [vmem:[%s718 + $0x30] sm:$0xff]
    %v726 = vld [vmem:[%s718 + $0x38] sm:$0xff]
    %v727 = vld [vmem:[%s718 + $0x40] sm:$0xff]
    %v728 = vld [vmem:[%s718 + $0x48] sm:$0xff]
    %v729 = vld [vmem:[%s718 + $0x50] sm:$0xff]
    %v730 = vld [vmem:[%s718 + $0x58] sm:$0xff]
    %v731 = vld [vmem:[%s718 + $0x60] sm:$0xff]
    %v732 = vld [vmem:[%s718 + $0x68] sm:$0xff]
    %v733 = vld [vmem:[%s718 + $0x70] sm:$0xff]
    %v734 = vld [vmem:[%s718 + $0x78] sm:$0xff]
    %v735 = vld [vmem:[%s718 + $0x80] sm:$0xff]
    %v736 = vld [vmem:[%s718 + $0x88] sm:$0xff]
    %v737 = vld [vmem:[%s718 + $0x90] sm:$0xff]
    %v738 = vld [vmem:[%s718 + $0x98] sm:$0xff]
    %v739 = vld [vmem:[%s718 + $0xa0] sm:$0xff]
    %v740 = vld [vmem:[%s718 + $0xa8] sm:$0xff]
    %v741 = vld [vmem:[%s718 + $0xb0] sm:$0xff]
    %v742 = vld [vmem:[%s718 + $0xb8] sm:$0xff]
    %v743 = vld [vmem:[%s718 + $0xc0] sm:$0xff]
    %v744 = vld [vmem:[%s718 + $0xc8] sm:$0xff]
    %v745 = vld [vmem:[%s718 + $0xd0] sm:$0xff]
    %v746 = vld [vmem:[%s718 + $0xd8] sm:$0xff]
    %v747 = vld [vmem:[%s718 + $0xe0] sm:$0xff]
    %v748 = vld [vmem:[%s718 + $0xe8] sm:$0xff]
    %v749 = vld [vmem:[%s718 + $0xf0] sm:$0xff]
    %v750 = vld [vmem:[%s718 + $0xf8] sm:$0xff]
    %v783 = vunpack.c.l.b16 %v719
    %v784 = vunpack.c.h.b16 %v719
    %v785 = vunpack.c.l.b16 %v720
    %v786 = vunpack.c.h.b16 %v720
    %v787 = vunpack.c.l.b16 %v721
    %v788 = vunpack.c.h.b16 %v721
    %v789 = vunpack.c.l.b16 %v722
    %v790 = vunpack.c.h.b16 %v722
    %v791 = vunpack.c.l.b16 %v723
    %v792 = vunpack.c.h.b16 %v723
    %v793 = vunpack.c.l.b16 %v724
    %v794 = vunpack.c.h.b16 %v724
    %v795 = vunpack.c.l.b16 %v725
    %v796 = vunpack.c.h.b16 %v725
    %v797 = vunpack.c.l.b16 %v726
    %v798 = vunpack.c.h.b16 %v726
    %v799 = vunpack.c.l.b16 %v727
    %v800 = vunpack.c.h.b16 %v727
    %v801 = vunpack.c.l.b16 %v728
    %v802 = vunpack.c.h.b16 %v728
    %v803 = vunpack.c.l.b16 %v729
    %v804 = vunpack.c.h.b16 %v729
    %v805 = vunpack.c.l.b16 %v730
    %v806 = vunpack.c.h.b16 %v730
    %v807 = vunpack.c.l.b16 %v731
    %v808 = vunpack.c.h.b16 %v731
    %v809 = vunpack.c.l.b16 %v732
    %v810 = vunpack.c.h.b16 %v732
    %v811 = vunpack.c.l.b16 %v733
    %v812 = vunpack.c.h.b16 %v733
    %v813 = vunpack.c.l.b16 %v734
    %v814 = vunpack.c.h.b16 %v734
    %v815 = vunpack.c.l.b16 %v735
    %v816 = vunpack.c.h.b16 %v735
    %v817 = vunpack.c.l.b16 %v736
    %v818 = vunpack.c.h.b16 %v736
    %v819 = vunpack.c.l.b16 %v737
    %v820 = vunpack.c.h.b16 %v737
    %v821 = vunpack.c.l.b16 %v738
    %v822 = vunpack.c.h.b16 %v738
    %v823 = vunpack.c.l.b16 %v739
    %v824 = vunpack.c.h.b16 %v739
    %v825 = vunpack.c.l.b16 %v740
    %v826 = vunpack.c.h.b16 %v740
    %v827 = vunpack.c.l.b16 %v741
    %v828 = vunpack.c.h.b16 %v741
    %v829 = vunpack.c.l.b16 %v742
    %v830 = vunpack.c.h.b16 %v742
    %v831 = vunpack.c.l.b16 %v743
    %v832 = vunpack.c.h.b16 %v743
    %v833 = vunpack.c.l.b16 %v744
    %v834 = vunpack.c.h.b16 %v744
    %v835 = vunpack.c.l.b16 %v745
    %v836 = vunpack.c.h.b16 %v745
    %v837 = vunpack.c.l.b16 %v746
    %v838 = vunpack.c.h.b16 %v746
    %v839 = vunpack.c.l.b16 %v747
    %v840 = vunpack.c.h.b16 %v747
    %v841 = vunpack.c.l.b16 %v748
    %v842 = vunpack.c.h.b16 %v748
    %v843 = vunpack.c.l.b16 %v749
    %v844 = vunpack.c.h.b16 %v749
    %v845 = vunpack.c.l.b16 %v750
    %v846 = vunpack.c.h.b16 %v750
    %v847 = vpack.c.b16 %v787, %v783
    %v848 = vpack.c.b16 %v788, %v784
    %v849 = vpack.c.b16 %v789, %v785
    %v850 = vpack.c.b16 %v790, %v786
    %v851 = vpack.c.b16 %v795, %v791
    %v852 = vpack.c.b16 %v796, %v792
    %v853 = vpack.c.b16 %v797, %v793
    %v854 = vpack.c.b16 %v798, %v794
    %v855 = vpack.c.b16 %v803, %v799
    %v856 = vpack.c.b16 %v804, %v800
    %v857 = vpack.c.b16 %v805, %v801
    %v858 = vpack.c.b16 %v806, %v802
    %v859 = vpack.c.b16 %v811, %v807
    %v860 = vpack.c.b16 %v812, %v808
    %v861 = vpack.c.b16 %v813, %v809
    %v862 = vpack.c.b16 %v814, %v810
    %v863 = vpack.c.b16 %v819, %v815
    %v864 = vpack.c.b16 %v820, %v816
    %v865 = vpack.c.b16 %v821, %v817
    %v866 = vpack.c.b16 %v822, %v818
    %v867 = vpack.c.b16 %v827, %v823
    %v868 = vpack.c.b16 %v828, %v824
    %v869 = vpack.c.b16 %v829, %v825
    %v870 = vpack.c.b16 %v830, %v826
    %v871 = vpack.c.b16 %v835, %v831
    %v872 = vpack.c.b16 %v836, %v832
    %v873 = vpack.c.b16 %v837, %v833
    %v874 = vpack.c.b16 %v838, %v834
    %v875 = vpack.c.b16 %v843, %v839
    %v876 = vpack.c.b16 %v844, %v840
    %v877 = vpack.c.b16 %v845, %v841
    %v878 = vpack.c.b16 %v846, %v842
    %911 = vmatprep.subr.bf16.mxu0 %v848
    %912 = vmatpush1.bf16.msra.mxu0 %v847
    %913 = vmatprep.subr.bf16.mxu0 %v852
    %914 = vmatpush1.bf16.msra.mxu0 %v851
    %915 = vmatprep.subr.bf16.mxu0 %v856
    %916 = vmatpush1.bf16.msra.mxu0 %v855
    %917 = vmatprep.subr.bf16.mxu0 %v860
    %918 = vmatpush1.bf16.msra.mxu0 %v859
    %919 = vmatprep.subr.bf16.mxu0 %v864
    %920 = vmatpush1.bf16.msra.mxu0 %v863
    %921 = vmatprep.subr.bf16.mxu0 %v868
    %922 = vmatpush1.bf16.msra.mxu0 %v867
    %923 = vmatprep.subr.bf16.mxu0 %v872
    %924 = vmatpush1.bf16.msra.mxu0 %v871
    %925 = vmatprep.subr.bf16.mxu0 %v876
    %926 = vmatpush1.bf16.msra.mxu0 %v875
    %927 = vmatprep.subr.bf16.mxu0 0
    %928 = vmatpush1.bf16.msra.mxu0 0
    %929 = vmatprep.subr.bf16.mxu0 0
    %930 = vmatpush1.bf16.msra.mxu0 0
    %931 = vmatprep.subr.bf16.mxu0 0
    %932 = vmatpush1.bf16.msra.mxu0 0
    %933 = vmatprep.subr.bf16.mxu0 0
    %934 = vmatpush1.bf16.msra.mxu0 0
    %935 = vmatprep.subr.bf16.mxu0 0
    %936 = vmatpush1.bf16.msra.mxu0 0
    %937 = vmatprep.subr.bf16.mxu0 0
    %938 = vmatpush1.bf16.msra.mxu0 0
    %939 = vmatprep.subr.bf16.mxu0 0
    %940 = vmatpush1.bf16.msra.mxu0 0
    %941 = vmatprep.subr.bf16.mxu0 0
    %942 = vmatpush1.bf16.msra.mxu0 0
    %943 = vmatprep.mubr.bf16.mxu0 0
    %944 = vmatmul.mubr.bf16.gmra.mrb[0].mxu0 %v717
    %v945 = vpop.f32.mrb[0].mxu0
    %v946 = vadd.f32 0.0, %v945
    %v947 = vpop.f32.mrb[0].mxu0
    %v948 = vadd.f32 0.0, %v947
    %v949 = vpop.f32.mrb[0].mxu0
    %v950 = vpop.f32.mrb[0].mxu0
    %951 = vdwg.mxu0
    %952 = vmatprep.subr.bf16.mxu0 %v850
    %953 = vmatpush1.bf16.msra.mxu0 %v849
    %954 = vmatprep.subr.bf16.mxu0 %v854
    %955 = vmatpush1.bf16.msra.mxu0 %v853
    %956 = vmatprep.subr.bf16.mxu0 %v858
    %957 = vmatpush1.bf16.msra.mxu0 %v857
    %958 = vmatprep.subr.bf16.mxu0 %v862
    %959 = vmatpush1.bf16.msra.mxu0 %v861
    %960 = vmatprep.subr.bf16.mxu0 %v866
    %961 = vmatpush1.bf16.msra.mxu0 %v865
    %962 = vmatprep.subr.bf16.mxu0 %v870
    %963 = vmatpush1.bf16.msra.mxu0 %v869
    %964 = vmatprep.subr.bf16.mxu0 %v874
    %965 = vmatpush1.bf16.msra.mxu0 %v873
    %966 = vmatprep.subr.bf16.mxu0 %v878
    %967 = vmatpush1.bf16.msra.mxu0 %v877
    %968 = vmatprep.subr.bf16.mxu0 0
    %969 = vmatpush1.bf16.msra.mxu0 0
    %970 = vmatprep.subr.bf16.mxu0 0
    %971 = vmatpush1.bf16.msra.mxu0 0
    %972 = vmatprep.subr.bf16.mxu0 0
    %973 = vmatpush1.bf16.msra.mxu0 0
    %974 = vmatprep.subr.bf16.mxu0 0
    %975 = vmatpush1.bf16.msra.mxu0 0
    %976 = vmatprep.subr.bf16.mxu0 0
    %977 = vmatpush1.bf16.msra.mxu0 0
    %978 = vmatprep.subr.bf16.mxu0 0
    %979 = vmatpush1.bf16.msra.mxu0 0
    %980 = vmatprep.subr.bf16.mxu0 0
    %981 = vmatpush1.bf16.msra.mxu0 0
    %982 = vmatprep.subr.bf16.mxu0 0
    %983 = vmatpush1.bf16.msra.mxu0 0
    %984 = vmatprep.mubr.bf16.mxu0 0
    %985 = vmatmul.mubr.bf16.gmra.mrb[0].mxu0 %v717
    %v986 = vpop.f32.mrb[0].mxu0
    %v987 = vadd.f32 0.0, %v986
    %v988 = vpop.f32.mrb[0].mxu0
    %v989 = vadd.f32 0.0, %v988
    %v990 = vpop.f32.mrb[0].mxu0
    %v991 = vpop.f32.mrb[0].mxu0
    %992 = vdwg.mxu0
    %v1025 = vunpack.c.l.b16 %v685
    %v1026 = vunpack.c.h.b16 %v685
    %v1027 = vunpack.c.l.b16 %v686
    %v1028 = vunpack.c.h.b16 %v686
    %v1029 = vunpack.c.l.b16 %v687
    %v1030 = vunpack.c.h.b16 %v687
    %v1031 = vunpack.c.l.b16 %v688
    %v1032 = vunpack.c.h.b16 %v688
    %v1033 = vunpack.c.l.b16 %v689
    %v1034 = vunpack.c.h.b16 %v689
    %v1035 = vunpack.c.l.b16 %v690
    %v1036 = vunpack.c.h.b16 %v690
    %v1037 = vunpack.c.l.b16 %v691
    %v1038 = vunpack.c.h.b16 %v691
    %v1039 = vunpack.c.l.b16 %v692
    %v1040 = vunpack.c.h.b16 %v692
    %v1041 = vunpack.c.l.b16 %v693
    %v1042 = vunpack.c.h.b16 %v693
    %v1043 = vunpack.c.l.b16 %v694
    %v1044 = vunpack.c.h.b16 %v694
    %v1045 = vunpack.c.l.b16 %v695
    %v1046 = vunpack.c.h.b16 %v695
    %v1047 = vunpack.c.l.b16 %v696
    %v1048 = vunpack.c.h.b16 %v696
    %v1049 = vunpack.c.l.b16 %v697
    %v1050 = vunpack.c.h.b16 %v697
    %v1051 = vunpack.c.l.b16 %v698
    %v1052 = vunpack.c.h.b16 %v698
    %v1053 = vunpack.c.l.b16 %v699
    %v1054 = vunpack.c.h.b16 %v699
    %v1055 = vunpack.c.l.b16 %v700
    %v1056 = vunpack.c.h.b16 %v700
    %v1057 = vunpack.c.l.b16 %v701
    %v1058 = vunpack.c.h.b16 %v701
    %v1059 = vunpack.c.l.b16 %v702
    %v1060 = vunpack.c.h.b16 %v702
    %v1061 = vunpack.c.l.b16 %v703
    %v1062 = vunpack.c.h.b16 %v703
    %v1063 = vunpack.c.l.b16 %v704
    %v1064 = vunpack.c.h.b16 %v704
    %v1065 = vunpack.c.l.b16 %v705
    %v1066 = vunpack.c.h.b16 %v705
    %v1067 = vunpack.c.l.b16 %v706
    %v1068 = vunpack.c.h.b16 %v706
    %v1069 = vunpack.c.l.b16 %v707
    %v1070 = vunpack.c.h.b16 %v707
    %v1071 = vunpack.c.l.b16 %v708
    %v1072 = vunpack.c.h.b16 %v708
    %v1073 = vunpack.c.l.b16 %v709
    %v1074 = vunpack.c.h.b16 %v709
    %v1075 = vunpack.c.l.b16 %v710
    %v1076 = vunpack.c.h.b16 %v710
    %v1077 = vunpack.c.l.b16 %v711
    %v1078 = vunpack.c.h.b16 %v711
    %v1079 = vunpack.c.l.b16 %v712
    %v1080 = vunpack.c.h.b16 %v712
    %v1081 = vunpack.c.l.b16 %v713
    %v1082 = vunpack.c.h.b16 %v713
    %v1083 = vunpack.c.l.b16 %v714
    %v1084 = vunpack.c.h.b16 %v714
    %v1085 = vunpack.c.l.b16 %v715
    %v1086 = vunpack.c.h.b16 %v715
    %v1087 = vunpack.c.l.b16 %v716
    %v1088 = vunpack.c.h.b16 %v716
    %v1089 = vpack.c.b16 %v1029, %v1025
    %v1090 = vpack.c.b16 %v1030, %v1026
    %v1091 = vpack.c.b16 %v1031, %v1027
    %v1092 = vpack.c.b16 %v1032, %v1028
    %v1093 = vpack.c.b16 %v1037, %v1033
    %v1094 = vpack.c.b16 %v1038, %v1034
    %v1095 = vpack.c.b16 %v1039, %v1035
    %v1096 = vpack.c.b16 %v1040, %v1036
    %v1097 = vpack.c.b16 %v1045, %v1041
    %v1098 = vpack.c.b16 %v1046, %v1042
    %v1099 = vpack.c.b16 %v1047, %v1043
    %v1100 = vpack.c.b16 %v1048, %v1044
    %v1101 = vpack.c.b16 %v1053, %v1049
    %v1102 = vpack.c.b16 %v1054, %v1050
    %v1103 = vpack.c.b16 %v1055, %v1051
    %v1104 = vpack.c.b16 %v1056, %v1052
    %v1105 = vpack.c.b16 %v1061, %v1057
    %v1106 = vpack.c.b16 %v1062, %v1058
    %v1107 = vpack.c.b16 %v1063, %v1059
    %v1108 = vpack.c.b16 %v1064, %v1060
    %v1109 = vpack.c.b16 %v1069, %v1065
    %v1110 = vpack.c.b16 %v1070, %v1066
    %v1111 = vpack.c.b16 %v1071, %v1067
    %v1112 = vpack.c.b16 %v1072, %v1068
    %v1113 = vpack.c.b16 %v1077, %v1073
    %v1114 = vpack.c.b16 %v1078, %v1074
    %v1115 = vpack.c.b16 %v1079, %v1075
    %v1116 = vpack.c.b16 %v1080, %v1076
    %v1117 = vpack.c.b16 %v1085, %v1081
    %v1118 = vpack.c.b16 %v1086, %v1082
    %v1119 = vpack.c.b16 %v1087, %v1083
    %v1120 = vpack.c.b16 %v1088, %v1084
    %1153 = vmatprep.subr.bf16.mxu0 %v1090
    %1154 = vmatpush1.bf16.msra.mxu0 %v1089
    %1155 = vmatprep.subr.bf16.mxu0 %v1094
    %1156 = vmatpush1.bf16.msra.mxu0 %v1093
    %1157 = vmatprep.subr.bf16.mxu0 %v1098
    %1158 = vmatpush1.bf16.msra.mxu0 %v1097
    %1159 = vmatprep.subr.bf16.mxu0 %v1102
    %1160 = vmatpush1.bf16.msra.mxu0 %v1101
    %1161 = vmatprep.subr.bf16.mxu0 %v1106
    %1162 = vmatpush1.bf16.msra.mxu0 %v1105
    %1163 = vmatprep.subr.bf16.mxu0 %v1110
    %1164 = vmatpush1.bf16.msra.mxu0 %v1109
    %1165 = vmatprep.subr.bf16.mxu0 %v1114
    %1166 = vmatpush1.bf16.msra.mxu0 %v1113
    %1167 = vmatprep.subr.bf16.mxu0 %v1118
    %1168 = vmatpush1.bf16.msra.mxu0 %v1117
    %1169 = vmatprep.subr.bf16.mxu0 0
    %1170 = vmatpush1.bf16.msra.mxu0 0
    %1171 = vmatprep.subr.bf16.mxu0 0
    %1172 = vmatpush1.bf16.msra.mxu0 0
    %1173 = vmatprep.subr.bf16.mxu0 0
    %1174 = vmatpush1.bf16.msra.mxu0 0
    %1175 = vmatprep.subr.bf16.mxu0 0
    %1176 = vmatpush1.bf16.msra.mxu0 0
    %1177 = vmatprep.subr.bf16.mxu0 0
    %1178 = vmatpush1.bf16.msra.mxu0 0
    %1179 = vmatprep.subr.bf16.mxu0 0
    %1180 = vmatpush1.bf16.msra.mxu0 0
    %1181 = vmatprep.subr.bf16.mxu0 0
    %1182 = vmatpush1.bf16.msra.mxu0 0
    %1183 = vmatprep.subr.bf16.mxu0 0
    %1184 = vmatpush1.bf16.msra.mxu0 0
    %1185 = vmatprep.mubr.bf16.mxu0 0
    %1186 = vmatmul.mubr.bf16.gmra.mrb[0].mxu0 %v681
    %v1187 = vpop.f32.mrb[0].mxu0
    %v1188 = vadd.f32 %v946, %v1187
    %v1189 = vpop.f32.mrb[0].mxu0
    %v1190 = vadd.f32 %v948, %v1189
    %v1191 = vpop.f32.mrb[0].mxu0
    %v1192 = vpop.f32.mrb[0].mxu0
    %1193 = vdwg.mxu0
    %1194 = vmatprep.subr.bf16.mxu0 %v1092
    %1195 = vmatpush1.bf16.msra.mxu0 %v1091
    %1196 = vmatprep.subr.bf16.mxu0 %v1096
    %1197 = vmatpush1.bf16.msra.mxu0 %v1095
    %1198 = vmatprep.subr.bf16.mxu0 %v1100
    %1199 = vmatpush1.bf16.msra.mxu0 %v1099
    %1200 = vmatprep.subr.bf16.mxu0 %v1104
    %1201 = vmatpush1.bf16.msra.mxu0 %v1103
    %1202 = vmatprep.subr.bf16.mxu0 %v1108
    %1203 = vmatpush1.bf16.msra.mxu0 %v1107
    %1204 = vmatprep.subr.bf16.mxu0 %v1112
    %1205 = vmatpush1.bf16.msra.mxu0 %v1111
    %1206 = vmatprep.subr.bf16.mxu0 %v1116
    %1207 = vmatpush1.bf16.msra.mxu0 %v1115
    %1208 = vmatprep.subr.bf16.mxu0 %v1120
    %1209 = vmatpush1.bf16.msra.mxu0 %v1119
    %1210 = vmatprep.subr.bf16.mxu0 0
    %1211 = vmatpush1.bf16.msra.mxu0 0
    %1212 = vmatprep.subr.bf16.mxu0 0
    %1213 = vmatpush1.bf16.msra.mxu0 0
    %1214 = vmatprep.subr.bf16.mxu0 0
    %1215 = vmatpush1.bf16.msra.mxu0 0
    %1216 = vmatprep.subr.bf16.mxu0 0
    %1217 = vmatpush1.bf16.msra.mxu0 0
    %1218 = vmatprep.subr.bf16.mxu0 0
    %1219 = vmatpush1.bf16.msra.mxu0 0
    %1220 = vmatprep.subr.bf16.mxu0 0
    %1221 = vmatpush1.bf16.msra.mxu0 0
    %1222 = vmatprep.subr.bf16.mxu0 0
    %1223 = vmatpush1.bf16.msra.mxu0 0
    %1224 = vmatprep.subr.bf16.mxu0 0
    %1225 = vmatpush1.bf16.msra.mxu0 0
    %1226 = vmatprep.mubr.bf16.mxu0 0
    %1227 = vmatmul.mubr.bf16.gmra.mrb[0].mxu0 %v681
    %v1228 = vpop.f32.mrb[0].mxu0
    %v1229 = vadd.f32 %v987, %v1228
    %v1230 = vpop.f32.mrb[0].mxu0
    %v1231 = vadd.f32 %v989, %v1230
    %v1232 = vpop.f32.mrb[0].mxu0
    %v1233 = vpop.f32.mrb[0].mxu0
    %1234 = vdwg.mxu0
    %s1235 = scalar_lea.vmem %s6, 4
    %v1236 = vld [vmem:[%s1235] sm:$0xf]
    %v1238 = vlaneseq
    %v1239 = vshrl.u32 %v1238, 7
    %v1240 = vsub.s32 0, %v1239
    %v1241 = vrot.slane %v1236, %v1240
    %v1242 = vlaneseq
    %v1243 = vshrl.u32 %v1242, 7
    %v1244 = vsub.s32 1, %v1243
    %v1245 = vrot.slane %v1236, %v1244
    %v1246 = vlaneseq
    %v1247 = vshrl.u32 %v1246, 7
    %v1248 = vsub.s32 2, %v1247
    %v1249 = vrot.slane %v1236, %v1248
    %v1250 = vlaneseq
    %v1251 = vshrl.u32 %v1250, 7
    %v1252 = vsub.s32 3, %v1251
    %v1253 = vrot.slane %v1236, %v1252
    %v1258 = vadd.f32 %v1188, %v1241
    %v1259 = vadd.f32 %v1190, %v1245
    %v1260 = vadd.f32 %v1229, %v1249
    %v1261 = vadd.f32 %v1231, %v1253
    %v1262 = vxor.u32 %v1258, 2147483648
    %v1263 = vmul.f32 %v1262, 1.442695
    %v1264 = vpow.pop %v1263
    %v1265 = vadd.f32 %v1264, 1.0
    %v1266 = vrcp.pop %v1265
    %v1267 = vmul.f32 1.0, %v1266
    %v1268 = vxor.u32 %v1259, 2147483648
    %v1269 = vmul.f32 %v1268, 1.442695
    %v1270 = vpow.pop %v1269
    %v1271 = vadd.f32 %v1270, 1.0
    %v1272 = vrcp.pop %v1271
    %v1273 = vmul.f32 1.0, %v1272
    %v1274 = vmul.f32 %v1267, %v1261
    %v1275 = vadd.f32 %v1260, %v1274
    %v1276 = vtanh.pop %v1275
    %v1277 = vsub.f32 1.0, %v1273
    %v1278 = vmul.f32 %v1277, %v1276
    %v1279 = vmul.f32 %v1273, %v684
    %v1280 = vadd.f32 %v1278, %v1279
    %s1281 = scalar_lea.vmem %s10, 8
    %1282 = vst [vmem:[%s1281] sm:$0xff] %v1280
    %v1283 = vlaneseq
    %v1284 = vand.u32 %v1283, 127
    %vm1285 = vcmp.lt.s32.totalorder %v1284, 32
    %v1286 = vsel %vm1285, 1, 0
    %v1287 = vcvt.s32.f32 %v1286
    %v1288 = vmul.f32 %v1280, %v1287
    %1289 = vadd.xlane.f32.xlu0 %v1288
    %v1290 = vpop.xlane.xlu0 %1289
    %v1291 = vmul.f32 %v1290, 0.03125
    %v1292 = vsub.f32 %v1288, %v1291
    %v1293 = vmul.f32 %v1292, %v1287
    %v1294 = vmul.f32 %v1293, %v1293
    %1295 = vadd.xlane.f32.xlu0 %v1294
    %v1296 = vpop.xlane.xlu0 %1295
    %v1297 = vmul.f32 %v1296, 0.03125
    %v1298 = vadd.f32 %v1297, 1e-05
    %v1299 = vrsqrt.pop %v1298
    %v1300 = vmul.f32 %v1293, %v1299
    %v1301 = vld [vmem:[%s7] sm:$0x1]
    %v1303 = vlaneseq
    %v1304 = vshrl.u32 %v1303, 7
    %v1305 = vsub.s32 0, %v1304
    %v1306 = vrot.slane %v1301, %v1305
    %v1308 = vmul.f32 %v1300, %v1306
    %v1309 = vld [vmem:[%s8] sm:$0x1]
    %v1311 = vlaneseq
    %v1312 = vshrl.u32 %v1311, 7
    %v1313 = vsub.s32 0, %v1312
    %v1314 = vrot.slane %v1309, %v1313
    %v1316 = vadd.f32 %v1308, %v1314
    %1317 = vst [vmem:[#allocation8] sm:$0xff] %v1316
    // Predicated region
    $region50: #{forward.1} parent=1 // pred_check
      _
    $region51: #{forward.1} parent=1 // pred_check_branch
      %1319 = sbr.rel (0) target = $region53
    $region52: #{forward.1} parent=1 // pred_region
      %s1321 = ssub.s32 128, 128
      %1322 = vsyncadd [#allocation4], %s1321
      %s1324 = sshll.u32 [#allocation8], 4
      %s1325 = int_to_ptr.vmem [resolvable:$true] %s1324
      %1327 = dma.vmem_to_hbm [thread:$0]  %s1325, 128, %s9, [#allocation4]
    $region53: #{forward.1} parent=1 // pred_fallthru
      _
    // Predicated region
    $region54: #{forward.1} parent=1 // pred_check
      _
    $region55: #{forward.1} parent=1 // pred_check_branch
      %1329 = sbr.rel (0) target = $region57
    $region56: #{forward.1} parent=1 // pred_region
      _
    $region57: #{forward.1} parent=1 // pred_fallthru
      _
    // Predicated region
    $region58: #{forward.1} parent=1 // pred_check
      _
    $region59: #{forward.1} parent=1 // pred_check_branch
      %1331 = sbr.rel (0) target = $region61
    $region60: #{forward.1} parent=1 // pred_region
      %1332 = dma.done [#allocation4], 128
    $region61: #{forward.1} parent=1 // pred_fallthru
      _
    // Predicated region
    $region62: #{forward.1} parent=1 // pred_check
      _
    $region63: #{forward.1} parent=1 // pred_check_branch
      %1334 = sbr.rel (0) target = $region65
    $region64: #{forward.1} parent=1 // pred_region
      _
    $region65: #{forward.1} parent=1 // pred_fallthru
      _
    %1335 = vsyncpa [#allocation3], 1
    %1336 = vsyncpa [#allocation6], 1
    %1337 = vsyncpa [#allocation4], 1

</llo_original>
